<compile_context>
chip_gen: v7x
topology: tpu7x:2x2x1
jax: 0.10.0
libtpu: 0.0.40
codegen_flags: <defaults>
</compile_context>

<pallas_src>
import jax
import jax.numpy as jnp
from jax.experimental import pallas as pl
from jax.experimental.pallas import tpu as pltpu


def _round_up(x, m):
    return ((x + m - 1) // m) * m


def _make_grouped_kernel(tb, steps_per_core):
    """Kernel for one (batch-tile, relation-group) step of the projection."""
    two_tb = 2 * tb

    def kernel(tile_ref, rel_ref, valid_ref, rstart_ref, rcount_ref,
               ht_ref, proj_ref, out_ref):
        # tile_ref/rel_ref/valid_ref/rstart_ref/rcount_ref: SMEM scalar schedules
        # ht_ref   : (2*tb, E_pad) bf16  head rows [0,tb) + tail rows [tb,2tb)
        # proj_ref : (1, E_pad, R_pad) bf16  this step's relation matrix (K-major)
        # out_ref  : (2*tb, R_pad) f32  projected heads/tails (resident per tile)
        c = pl.program_id(0)
        s = pl.program_id(1)
        idx = c * steps_per_core + s

        @pl.when(valid_ref[idx] == 1)
        def _step():
            rstart = rstart_ref[idx]
            rcount = rcount_ref[idx]
            # Rows are sorted by relation, so rstart==0 iff this is the first
            # group touching this output tile, and rcount==tb iff the whole
            # tile belongs to this single relation.
            first = rstart == 0
            full = rcount == tb

            # One fused MXU matmul projects both the head half and the tail
            # half of the tile: bf16 x bf16 with f32 accumulation.
            acc = jax.lax.dot_general(
                ht_ref[...], proj_ref[0],
                dimension_numbers=(((1,), (0,)), ((), ())),
                preferred_element_type=jnp.float32)          # (2*tb, R_pad)

            whole = jnp.logical_and(first, full)

            @pl.when(whole)
            def _store():  # fast path: single-relation tile, pure matmul + store
                out_ref[...] = acc

            @pl.when(jnp.logical_not(whole))
            def _accumulate():
                @pl.when(first)
                def _zero():
                    out_ref[...] = jnp.zeros_like(out_ref)
                row = jax.lax.broadcasted_iota(jnp.int32, (two_tb, 1), 0)
                rloc = jnp.where(row >= tb, row - tb, row)   # triple index of row
                mask = jnp.logical_and(rloc >= rstart, rloc < rstart + rcount)
                out_ref[...] += jnp.where(mask, acc, 0.0)

    return kernel


def _make_core_schedule(rel_sorted, num_groups, tb, tiles_per_core, num_cores):
    """Per-core (tile, group, valid, row_start, row_count) schedules.

    rel_sorted : (b_pad,) int32, sorted ascending, values in [0, num_groups-1]
    Each core owns tiles [c*tiles_per_core, (c+1)*tiles_per_core).  Steps for
    the same output tile are consecutive (accumulator residency); unused
    trailing steps are marked invalid and skipped in-kernel.
    Returns five flattened (num_cores * S,) int32 arrays (S = steps per core).
    """
    counts = jnp.zeros((num_groups,), jnp.int32).at[rel_sorted].add(1)
    ends = jnp.cumsum(counts)                    # exclusive end row per group
    starts = ends - counts
    steps = tiles_per_core + num_groups - 1      # static per-core upper bound

    tiles, rels, valids, rstarts, rcounts = [], [], [], [], []
    for c in range(num_cores):
        r0 = c * tiles_per_core * tb
        r1 = (c + 1) * tiles_per_core * tb
        gs = jnp.clip(starts, r0, r1)            # group row range inside this core
        ge = jnp.clip(ends, r0, r1)
        cnt = ge - gs
        start_tile = gs // tb
        end_tile = jnp.maximum(ge - 1, r0) // tb
        tpg = jnp.where(cnt > 0, end_tile - start_tile + 1, 0)
        cum = jnp.cumsum(tpg)

        sidx = jnp.arange(steps, dtype=jnp.int32)
        g = jnp.searchsorted(cum, sidx, side="right").astype(jnp.int32)
        valid = (sidx < cum[-1]).astype(jnp.int32)
        g = jnp.minimum(g, num_groups - 1)
        local = sidx - (cum[g] - tpg[g])
        tile = start_tile[g] + local
        row_lo = jnp.maximum(gs[g], tile * tb)
        row_hi = jnp.minimum(ge[g], (tile + 1) * tb)
        rstart = row_lo - tile * tb
        rcount = row_hi - row_lo

        last_tile = (c + 1) * tiles_per_core - 1
        tiles.append(jnp.where(valid == 1, tile, last_tile))
        rels.append(jnp.where(valid == 1, g, num_groups - 1))
        valids.append(valid)
        rstarts.append(jnp.where(valid == 1, rstart, 1))
        rcounts.append(jnp.where(valid == 1, rcount, 0))

    cat = lambda xs: jnp.concatenate(xs).astype(jnp.int32)
    return (cat(tiles), cat(rels), cat(valids), cat(rstarts), cat(rcounts))


def transr_project_grouped(h_e, t_e, rel_ids, proj_er, *, tb=256, num_cores=2,
                           compute_dtype=jnp.bfloat16):
    """TransR projection for a batch of triples, grouped by relation id.

    h_e, t_e : (B, E) float32 head / tail entity embeddings
    rel_ids  : (B,)   int relation id per triple
    proj_er  : (NR, E, R) per-relation projection matrices, K-major layout
               (i.e. the transpose of the usual (R, E) matrix).
    Returns (h_proj, t_proj), each (B, R) float32, in the original row order.
    """
    B, E = h_e.shape
    NR, E2, R = proj_er.shape
    assert E2 == E
    rel_ids = rel_ids.astype(jnp.int32)

    e_pad = _round_up(E, 128)                    # lane-dense K
    r_pad = _round_up(R, 128)                    # lane-dense N (unmasked stores)
    num_tiles = pl.cdiv(B, tb)
    tiles_per_core = pl.cdiv(num_tiles, num_cores)
    total_tiles = tiles_per_core * num_cores
    b_pad = total_tiles * tb
    num_groups = NR + 1                          # +1 zero sentinel for pad rows
    steps_per_core = tiles_per_core + num_groups - 1
    two_tb = 2 * tb

    # Sort by relation so each relation occupies a contiguous row range.
    order = jnp.argsort(rel_ids)
    inv_order = jnp.argsort(order)
    rel_sorted = jnp.pad(rel_ids[order], (0, b_pad - B), constant_values=NR)

    def prep(x):  # sort, cast, zero-pad rows/cols, tile
        x = jnp.pad(x[order].astype(compute_dtype),
                    ((0, b_pad - B), (0, e_pad - E)))
        return x.reshape(total_tiles, tb, e_pad)

    # Fused LHS: per tile, head rows then tail rows -> one matmul per step.
    ht = jnp.stack([prep(h_e), prep(t_e)], axis=1).reshape(total_tiles * two_tb, e_pad)

    proj_padded = jnp.pad(proj_er.astype(compute_dtype),
                          ((0, 1), (0, e_pad - E), (0, r_pad - R)))

    step_tile, step_rel, step_valid, step_rstart, step_rcount = _make_core_schedule(
        rel_sorted, num_groups, tb, tiles_per_core, num_cores)

    # Double-buffered working set -> explicit VMEM budget (v5e scoped default
    # is only 16 MiB; v7x physical VMEM is 64 MiB, so cap well below that).
    in_bytes = jnp.dtype(compute_dtype).itemsize
    vmem_needed = (2 * two_tb * e_pad * in_bytes          # ht blocks
                   + 2 * e_pad * r_pad * in_bytes         # proj blocks
                   + 2 * two_tb * r_pad * 4)              # f32 output blocks
    vmem_limit = int(min(max(2 * vmem_needed + (4 << 20), 16 << 20), 48 << 20))

    sp = steps_per_core
    grid_spec = pltpu.PrefetchScalarGridSpec(
        num_scalar_prefetch=5,
        grid=(num_cores, steps_per_core),
        in_specs=[
            pl.BlockSpec((two_tb, e_pad),
                         lambda c, s, st, sr, sv, srs, src: (st[c * sp + s], 0)),
            pl.BlockSpec((1, e_pad, r_pad),
                         lambda c, s, st, sr, sv, srs, src: (sr[c * sp + s], 0, 0)),
        ],
        out_specs=pl.BlockSpec((two_tb, r_pad),
                               lambda c, s, st, sr, sv, srs, src: (st[c * sp + s], 0)),
    )

    out = pl.pallas_call(
        _make_grouped_kernel(tb, steps_per_core),
        out_shape=jax.ShapeDtypeStruct((total_tiles * two_tb, r_pad), jnp.float32),
        grid_spec=grid_spec,
        compiler_params=pltpu.CompilerParams(
            # Core axis is independent (disjoint tiles) -> parallel (2 TCs on
            # v7x); step axis revisits/accumulates output tiles -> arbitrary.
            dimension_semantics=("parallel", "arbitrary"),
            vmem_limit_bytes=vmem_limit),
    )(step_tile, step_rel, step_valid, step_rstart, step_rcount, ht, proj_padded)

    out = out.reshape(total_tiles, 2, tb, r_pad)
    h_proj = out[:, 0].reshape(b_pad, r_pad)[:B, :R][inv_order]
    t_proj = out[:, 1].reshape(b_pad, r_pad)[:B, :R][inv_order]
    return h_proj, t_proj


class TransRPretrainModelPallas:
    """JAX/Pallas reimplementation of TransRPretrainModel.forward."""

    def __init__(self, entity_total, relation_total,
                 ent_embedding_size, rel_embedding_size,
                 l1_flag=True, seed=0, batch_tile=256, num_cores=2,
                 compute_dtype=jnp.bfloat16):
        self.entity_total = entity_total
        self.relation_total = relation_total
        self.E = ent_embedding_size
        self.R = rel_embedding_size
        self.l1_flag = l1_flag
        self.tb = batch_tile
        self.num_cores = num_cores
        self.compute_dtype = compute_dtype

        key = jax.random.PRNGKey(seed)
        k_ent, k_rel = jax.random.split(key)
        # TODO(synk): the original module loads ent/rel embeddings from a transE
        # pickle checkpoint; deterministic synthetic init is used here instead.
        self.ent_embeddings = jax.random.normal(
            k_ent, (entity_total, self.E), dtype=jnp.float32) * 0.1
        self.rel_embeddings = jax.random.normal(
            k_rel, (relation_total, self.R), dtype=jnp.float32) * 0.1
        # nn.init.eye(proj_weight).view(-1).expand(relation_total, -1):
        # kept in its natural (NR, R, E) layout for the reference, plus a
        # K-major (NR, E, R) bf16 copy for the kernel (transposed ONCE here).
        eye = jnp.eye(self.R, self.E, dtype=jnp.float32)
        self.proj_table = jnp.broadcast_to(eye[None], (relation_total, self.R, self.E))
        self.proj_table_er = jnp.swapaxes(self.proj_table, 1, 2).astype(compute_dtype)

    def forward(self, pos_h, pos_t, pos_r, neg_h, neg_t, neg_r):
        B = pos_h.shape[0]
        # Fuse positive and negative branches into a single kernel invocation.
        h_idx = jnp.concatenate([pos_h, neg_h]).astype(jnp.int32)
        t_idx = jnp.concatenate([pos_t, neg_t]).astype(jnp.int32)
        r_idx = jnp.concatenate([pos_r, neg_r]).astype(jnp.int32)

        h_e = jnp.take(self.ent_embeddings, h_idx, axis=0)
        t_e = jnp.take(self.ent_embeddings, t_idx, axis=0)
        r_e = jnp.take(self.rel_embeddings, r_idx, axis=0)

        h_p, t_p = transr_project_grouped(
            h_e, t_e, r_idx, self.proj_table_er,
            tb=self.tb, num_cores=self.num_cores, compute_dtype=self.compute_dtype)

        # Trivial O(B*R) score; done outside the kernel so no last-dim-1
        # masked stores are emitted (XLA fuses this for free).
        diff = h_p + r_e - t_p
        if self.l1_flag:
            score = jnp.sum(jnp.abs(diff), axis=1)
        else:
            score = jnp.sum(diff * diff, axis=1)

        return (score[:B], score[B:], h_p[:B], t_p[:B], h_p[B:], t_p[B:])


def _reference_forward(model, pos_h, pos_t, pos_r, neg_h, neg_t, neg_r):
    """Pure-JAX f32 reference of the same forward (for the sanity check)."""
    hi = jax.lax.Precision.HIGHEST

    def branch(h_idx, t_idx, r_idx):
        h = jnp.take(model.ent_embeddings, h_idx, axis=0)
        t = jnp.take(model.ent_embeddings, t_idx, axis=0)
        r = jnp.take(model.rel_embeddings, r_idx, axis=0)
        pm = jnp.take(model.proj_table, r_idx, axis=0)
        hp = jnp.einsum('bre,be->br', pm, h, precision=hi)
        tp = jnp.einsum('bre,be->br', pm, t, precision=hi)
        d = hp + r - tp
        s = jnp.sum(jnp.abs(d), axis=1) if model.l1_flag else jnp.sum(d * d, axis=1)
        return s, hp, tp

    p, php, ptp = branch(pos_h, pos_t, pos_r)
    n, nhp, ntp = branch(neg_h, neg_t, neg_r)
    return p, n, php, ptp, nhp, ntp


if __name__ == "__main__":
    BATCH = 8
    ENT_SIZE = 32
    REL_SIZE = 32
    ENTITY_TOTAL = 50
    RELATION_TOTAL = 10

    model = TransRPretrainModelPallas(
        entity_total=ENTITY_TOTAL, relation_total=RELATION_TOTAL,
        ent_embedding_size=ENT_SIZE, rel_embedding_size=REL_SIZE,
        l1_flag=True, seed=0)

    key = jax.random.PRNGKey(0)
    ks = jax.random.split(key, 7)
    pos_h = jax.random.randint(ks[0], (BATCH,), 0, ENTITY_TOTAL, dtype=jnp.int32)
    pos_t = jax.random.randint(ks[1], (BATCH,), 0, ENTITY_TOTAL, dtype=jnp.int32)
    pos_r = jax.random.randint(ks[2], (BATCH,), 0, RELATION_TOTAL, dtype=jnp.int32)
    neg_h = jax.random.randint(ks[3], (BATCH,), 0, ENTITY_TOTAL, dtype=jnp.int32)
    neg_t = jax.random.randint(ks[4], (BATCH,), 0, ENTITY_TOTAL, dtype=jnp.int32)
    neg_r = jax.random.randint(ks[5], (BATCH,), 0, RELATION_TOTAL, dtype=jnp.int32)

    outs = model.forward(pos_h, pos_t, pos_r, neg_h, neg_t, neg_r)
    outs = jax.block_until_ready(outs)

    # Check against a pure-f32 reference. Tolerance is loosened because the
    # kernel uses bf16 inputs with f32 MXU accumulation (per the perf review).
    refs = _reference_forward(model, pos_h, pos_t, pos_r, neg_h, neg_t, neg_r)
    for o, r in zip(outs, refs):
        assert o.shape == r.shape, (o.shape, r.shape)
        assert jnp.allclose(o, r, atol=5e-2, rtol=5e-2), "mismatch vs reference"

    # Extra check of the grouped projection kernel with DISTINCT per-relation
    # matrices and a multi-tile / multi-group / two-core schedule (the eye init
    # above cannot detect group-selection or masking bugs).
    kk = jax.random.split(ks[6], 4)
    NR_C, B_C, TB_C = 6, 300, 64
    proj_c = jax.random.normal(kk[0], (NR_C, REL_SIZE, ENT_SIZE), jnp.float32) * 0.2
    h_c = jax.random.normal(kk[1], (B_C, ENT_SIZE), jnp.float32) * 0.1
    t_c = jax.random.normal(kk[2], (B_C, ENT_SIZE), jnp.float32) * 0.1
    r_c = jax.random.randint(kk[3], (B_C,), 0, NR_C, dtype=jnp.int32)
    hp_k, tp_k = transr_project_grouped(
        h_c, t_c, r_c, jnp.swapaxes(proj_c, 1, 2), tb=TB_C, num_cores=2)
    jax.block_until_ready((hp_k, tp_k))
    hi = jax.lax.Precision.HIGHEST
    hp_r = jnp.einsum('bre,be->br', proj_c[r_c], h_c, precision=hi)
    tp_r = jnp.einsum('bre,be->br', proj_c[r_c], t_c, precision=hi)
    assert jnp.allclose(hp_k, hp_r, atol=5e-2, rtol=5e-2), "h_proj mismatch"
    assert jnp.allclose(tp_k, tp_r, atol=5e-2, rtol=5e-2), "t_proj mismatch"

    print("KERNEL_OK")
</pallas_src>

<mosaic_0001>
module attributes {stable_mosaic.version = 11 : i64} {
  func.func @kernel(%arg0: i32, %arg1: i32, %arg2: memref<22xi32, #tpu.memory_space<smem>>, %arg3: memref<22xi32, #tpu.memory_space<smem>>, %arg4: memref<22xi32, #tpu.memory_space<smem>>, %arg5: memref<22xi32, #tpu.memory_space<smem>>, %arg6: memref<22xi32, #tpu.memory_space<smem>>, %arg7: memref<512x128xbf16, #tpu.memory_space<vmem>>, %arg8: memref<1x128x128xbf16, #tpu.memory_space<vmem>>, %arg9: memref<512x128xf32, #tpu.memory_space<vmem>>) attributes {dimension_semantics = [#tpu.dimension_semantics<parallel>, #tpu.dimension_semantics<arbitrary>], iteration_bounds = array<i64: 2, 11>, scalar_prefetch = 5 : i64, scratch_operands = 0 : i64, tpu.core_type = #tpu.core_type<tc>, window_params = [{transform_indices = @transform_0, window_bounds = array<i64: 512, 128>}, {transform_indices = @transform_1, window_bounds = array<i64: 1, 128, 128>}, {transform_indices = @transform_2, window_bounds = array<i64: 512, 128>}]} {
    %c11_i32 = arith.constant 11 : i32
    %0 = arith.muli %arg0, %c11_i32 : i32
    %1 = arith.addi %0, %arg1 : i32
    %2 = arith.index_cast %1 : i32 to index
    %3 = memref.load %arg4[%2] : memref<22xi32, #tpu.memory_space<smem>>
    %c1_i32 = arith.constant 1 : i32
    %4 = arith.cmpi eq, %3, %c1_i32 : i32
    %5 = arith.extui %4 : i1 to i32
    %c0_i32 = arith.constant 0 : i32
    %6 = arith.cmpi ne, %5, %c0_i32 : i32
    scf.if %6 {
      %7 = arith.index_cast %1 : i32 to index
      %8 = memref.load %arg5[%7] : memref<22xi32, #tpu.memory_space<smem>>
      %9 = arith.index_cast %1 : i32 to index
      %10 = memref.load %arg6[%9] : memref<22xi32, #tpu.memory_space<smem>>
      %c0_i32_0 = arith.constant 0 : i32
      %11 = arith.cmpi eq, %8, %c0_i32_0 : i32
      %c256_i32 = arith.constant 256 : i32
      %12 = arith.cmpi eq, %10, %c256_i32 : i32
      %c0 = arith.constant 0 : index
      %c0_1 = arith.constant 0 : index
      %13 = vector.load %arg7[%c0, %c0_1] : memref<512x128xbf16, #tpu.memory_space<vmem>>, vector<512x128xbf16>
      %c0_2 = arith.constant 0 : index
      %c0_3 = arith.constant 0 : index
      %c0_4 = arith.constant 0 : index
      %14 = vector.load %arg8[%c0_2, %c0_3, %c0_4] : memref<1x128x128xbf16, #tpu.memory_space<vmem>>, vector<1x128x128xbf16>
      %15 = vector.shape_cast %14 : vector<1x128x128xbf16> to vector<128x128xbf16>
      %cst = arith.constant dense<0.000000e+00> : vector<512x128xf32>
      %16 = tpu.matmul %13, %15, %cst {dimension_numbers = #tpu.dot_dimension_numbers<[1], [0], [0], [1], [0, 0, 1, 1], [], []>} : vector<512x128xbf16>, vector<128x128xbf16>, vector<512x128xf32> -> vector<512x128xf32>
      %17 = arith.andi %11, %12 : i1
      %18 = arith.extui %17 : i1 to i32
      %c0_i32_5 = arith.constant 0 : i32
      %19 = arith.cmpi ne, %18, %c0_i32_5 : i32
      scf.if %19 {
        %c0_7 = arith.constant 0 : index
        %c0_8 = arith.constant 0 : index
        %23 = vector.load %arg9[%c0_7, %c0_8] : memref<512x128xf32, #tpu.memory_space<vmem>>, vector<512x128xf32>
        tpu.vector_store %arg9[%c0_7, %c0_8], %16 {strides = array<i32>} : memref<512x128xf32, #tpu.memory_space<vmem>>, vector<512x128xf32>,
      } else {
      }
      %true = arith.constant true
      %20 = arith.xori %17, %true : i1
      %21 = arith.extui %20 : i1 to i32
      %c0_i32_6 = arith.constant 0 : i32
      %22 = arith.cmpi ne, %21, %c0_i32_6 : i32
      scf.if %22 {
        %23 = arith.extui %11 : i1 to i32
        %c0_i32_7 = arith.constant 0 : i32
        %24 = arith.cmpi ne, %23, %c0_i32_7 : i32
        scf.if %24 {
          %cst_15 = arith.constant 0.000000e+00 : f32
          %44 = vector.broadcast %cst_15 : f32 to vector<512x128xf32>
          %c0_16 = arith.constant 0 : index
          %c0_17 = arith.constant 0 : index
          %45 = vector.load %arg9[%c0_16, %c0_17] : memref<512x128xf32, #tpu.memory_space<vmem>>, vector<512x128xf32>
          tpu.vector_store %arg9[%c0_16, %c0_17], %44 {strides = array<i32>} : memref<512x128xf32, #tpu.memory_space<vmem>>, vector<512x128xf32>,
        } else {
        }
        %25 = tpu.iota {dimensions = array<i32: 0>} : vector<512x1xi32>
        %c256_i32_8 = arith.constant 256 : i32
        %26 = vector.broadcast %c256_i32_8 : i32 to vector<512x1xi32>
        %27 = arith.cmpi sge, %25, %26 : vector<512x1xi32>
        %c256_i32_9 = arith.constant 256 : i32
        %28 = vector.broadcast %c256_i32_9 : i32 to vector<512x1xi32>
        %29 = arith.subi %25, %28 : vector<512x1xi32>
        %30 = arith.select %27, %29, %25 : vector<512x1xi1>, vector<512x1xi32>
        %31 = vector.broadcast %8 : i32 to vector<512x1xi32>
        %32 = arith.cmpi sge, %30, %31 : vector<512x1xi32>
        %33 = arith.addi %8, %10 : i32
        %34 = vector.broadcast %33 : i32 to vector<512x1xi32>
        %35 = arith.cmpi slt, %30, %34 : vector<512x1xi32>
        %36 = arith.andi %32, %35 : vector<512x1xi1>
        %c0_10 = arith.constant 0 : index
        %c0_11 = arith.constant 0 : index
        %37 = vector.load %arg9[%c0_10, %c0_11] : memref<512x128xf32, #tpu.memory_space<vmem>>, vector<512x128xf32>
        %cst_12 = arith.constant 0.000000e+00 : f32
        %38 = vector.shape_cast %36 : vector<512x1xi1> to vector<512x1xi1>
        %39 = vector.broadcast %38 : vector<512x1xi1> to vector<512x128xi1>
        %40 = vector.broadcast %cst_12 : f32 to vector<512x128xf32>
        %41 = arith.select %39, %16, %40 : vector<512x128xi1>, vector<512x128xf32>
        %42 = arith.addf %37, %41 : vector<512x128xf32>
        %c0_13 = arith.constant 0 : index
        %c0_14 = arith.constant 0 : index
        %43 = vector.load %arg9[%c0_13, %c0_14] : memref<512x128xf32, #tpu.memory_space<vmem>>, vector<512x128xf32>
        tpu.vector_store %arg9[%c0_13, %c0_14], %42 {strides = array<i32>} : memref<512x128xf32, #tpu.memory_space<vmem>>, vector<512x128xf32>,
      } else {
      }
    } else {
    }
    return
  }
  func.func @transform_0(%arg0: i32, %arg1: i32, %arg2: memref<22xi32, #tpu.memory_space<smem>>, %arg3: memref<22xi32, #tpu.memory_space<smem>>, %arg4: memref<22xi32, #tpu.memory_space<smem>>, %arg5: memref<22xi32, #tpu.memory_space<smem>>, %arg6: memref<22xi32, #tpu.memory_space<smem>>) -> (i32, i32) {
    %c11_i32 = arith.constant 11 : i32
    %0 = arith.muli %arg0, %c11_i32 : i32
    %1 = arith.addi %0, %arg1 : i32
    %2 = arith.index_cast %1 : i32 to index
    %3 = memref.load %arg2[%2] : memref<22xi32, #tpu.memory_space<smem>>
    %c0_i32 = arith.constant 0 : i32
    %c0_i32_0 = arith.constant 0 : i32
    return %3, %c0_i32 : i32, i32
  }
  func.func @transform_1(%arg0: i32, %arg1: i32, %arg2: memref<22xi32, #tpu.memory_space<smem>>, %arg3: memref<22xi32, #tpu.memory_space<smem>>, %arg4: memref<22xi32, #tpu.memory_space<smem>>, %arg5: memref<22xi32, #tpu.memory_space<smem>>, %arg6: memref<22xi32, #tpu.memory_space<smem>>) -> (i32, i32, i32) {
    %c11_i32 = arith.constant 11 : i32
    %0 = arith.muli %arg0, %c11_i32 : i32
    %1 = arith.addi %0, %arg1 : i32
    %2 = arith.index_cast %1 : i32 to index
    %3 = memref.load %arg3[%2] : memref<22xi32, #tpu.memory_space<smem>>
    %c0_i32 = arith.constant 0 : i32
    %c0_i32_0 = arith.constant 0 : i32
    %c0_i32_1 = arith.constant 0 : i32
    return %3, %c0_i32, %c0_i32_0 : i32, i32, i32
  }
  func.func @transform_2(%arg0: i32, %arg1: i32, %arg2: memref<22xi32, #tpu.memory_space<smem>>, %arg3: memref<22xi32, #tpu.memory_space<smem>>, %arg4: memref<22xi32, #tpu.memory_space<smem>>, %arg5: memref<22xi32, #tpu.memory_space<smem>>, %arg6: memref<22xi32, #tpu.memory_space<smem>>) -> (i32, i32) {
    %c11_i32 = arith.constant 11 : i32
    %0 = arith.muli %arg0, %c11_i32 : i32
    %1 = arith.addi %0, %arg1 : i32
    %2 = arith.index_cast %1 : i32 to index
    %3 = memref.load %arg2[%2] : memref<22xi32, #tpu.memory_space<smem>>
    %c0_i32 = arith.constant 0 : i32
    %c0_i32_0 = arith.constant 0 : i32
    return %3, %c0_i32 : i32, i32
  }
}

</mosaic_0001>

<llo_original>
// kernel: tpu_custom_call.1
$region0: #{tpu_custom_call.1}
  #allocation0 [shape = 'u32[]', space=smem, size = 0x4, offset = 0x4, fixed_abs, tag = 'smem constant byte address 0x4 - core index']
  #allocation1 [shape = 'u32[144,128]{1,0:T(1,128)}', space=vmem, size = 0x12000, scoped, tag = 'internal scratch']
  #allocation2 [shape = 's32[1]{0}', space=sflag, size = 0x4, scoped, tag = 'scoped memory for tpu_custom_call.1']
  #allocation3 [shape = 'u8[512]{0}', space=smem, size = 0x200, scoped, tag = 'prefetched SMEM operand 0']
  #allocation4 [shape = 'u8[512]{0}', space=smem, size = 0x200, scoped, tag = 'prefetched SMEM operand 1']
  #allocation5 [shape = 'u8[512]{0}', space=smem, size = 0x200, scoped, tag = 'prefetched SMEM operand 2']
  #allocation6 [shape = 'u8[512]{0}', space=smem, size = 0x200, scoped, tag = 'prefetched SMEM operand 3']
  #allocation7 [shape = 'u8[512]{0}', space=smem, size = 0x200, scoped, tag = 'prefetched SMEM operand 4']
  %s0 = inlined_call_operand.hbm [shape: s32[22], index: 0, kind: input, shape index: {}]
  %s1 = inlined_call_operand.vmem [shape: s32[22], index: 1, kind: input, shape index: {}]
  %s2 = inlined_call_operand.vmem [shape: s32[22], index: 2, kind: input, shape index: {}]
  %s3 = inlined_call_operand.vmem [shape: s32[22], index: 3, kind: input, shape index: {}]
  %s4 = inlined_call_operand.vmem [shape: s32[22], index: 4, kind: input, shape index: {}]
  %s5 = inlined_call_operand.hbm [shape: bf16[1024,128], index: 5, kind: input, shape index: {}]
  %s6 = inlined_call_operand.hbm [shape: bf16[11,128,128], index: 6, kind: input, shape index: {}]
  %s7 = inlined_call_operand.hbm [shape: f32[1024,128], index: 7, kind: output, shape index: {}]
  %s8 = sld [smem:[#allocation0]]
  $region65: #{tpu_custom_call.1} parent=0
    _
  %s10 = ssub.s32 1, %s8
  %s11 = scalar_select 0, %s10, %s8
  %13 = dma.hbm_to_smem %s0, 16, [#allocation3], [#allocation2]
  %s14 = sshll.u32 %s1, 4
  %s15 = int_to_ptr.vmem [resolvable:$true] %s14
  %17 = dma.vmem_to_smem %s15, 16, [#allocation4], [#allocation2]
  %s18 = sshll.u32 %s2, 4
  %s19 = int_to_ptr.vmem [resolvable:$true] %s18
  %21 = dma.vmem_to_smem %s19, 16, [#allocation5], [#allocation2]
  %s22 = sshll.u32 %s3, 4
  %s23 = int_to_ptr.vmem [resolvable:$true] %s22
  %25 = dma.vmem_to_smem %s23, 16, [#allocation6], [#allocation2]
  %s26 = sshll.u32 %s4, 4
  %s27 = int_to_ptr.vmem [resolvable:$true] %s26
  %29 = dma.vmem_to_smem %s27, 16, [#allocation7], [#allocation2]
  %30 = dma.done [#allocation2], 80
  %31 = sfence
  $region1: #{tpu_custom_call.1} parent=0
    #allocation8 [shape = 'u8[262144]{0}', space=vmem, size = 0x40000, scoped, tag = 'input window, operand 5']
    #allocation9 [shape = 's32[2]{0}', space=sflag, size = 0x8, scoped, tag = 'scoped memory for tpu_custom_call.1']
    #allocation10 [shape = 's32[2]{0}', space=sflag, size = 0x8, scoped, tag = 'scoped memory for tpu_custom_call.1']
    #allocation11 [shape = 'u8[65536]{0}', space=vmem, size = 0x10000, scoped, tag = 'input window, operand 6']
    #allocation12 [shape = 's32[2]{0}', space=sflag, size = 0x8, scoped, tag = 'scoped memory for tpu_custom_call.1']
    #allocation13 [shape = 'u8[524288]{0}', space=vmem, size = 0x80000, scoped, tag = 'output window, operand 0']
    %32 = vsyncpa [#allocation9], 0
    %s33 = scalar_lea.sflag [#allocation9], 1
    %34 = vsyncpa %s33, 0
    %35 = vsyncpa [#allocation12], 0
    %s36 = scalar_lea.sflag [#allocation12], 1
    %37 = vsyncpa %s36, 0
    %38 = vsyncpa [#allocation10], 0
    %s39 = scalar_lea.sflag [#allocation10], 1
    %40 = vsyncpa %s39, 0
    loop: start=0, step=1, limit=24
    $region2: #{tpu_custom_call.1} parent=1 // loop_pre_header
      _
    $region3: #{tpu_custom_call.1} parent=1 // loop_header
      %s42 = sphi 0, %s46
      %p43 = scmp.ge.s32.totalorder %s42, 24
      %s49 = sphi 0, %s61
      %s50 = sphi 0, %s57
      %s51 = sphi 0, %s49
      %s52 = sphi 0, %s50
      %s53 = sphi 0, %s51
      %s54 = sphi 0, %s52
      %s70 = sphi 0, %s72
      %s73 = sphi 0, %s70
      %s74 = sphi 0, %s73
      %s90 = sphi 0, %s74
      %s102 = sphi 0, %s104
      %s105 = sphi 0, %s102
      %s106 = sphi 0, %s105
      %s122 = sphi 0, %s106
      %s134 = sphi 0, %s136
      %s137 = sphi 0, %s134
      %s138 = sphi 0, %s137
      %s154 = sphi 0, %s138
    $region4: #{tpu_custom_call.1} parent=1 // loop_header_branch
      %45 = sbr.rel (%p43) target = $region8
    $region5: #{tpu_custom_call.1} parent=1 // loop_body
      %s47 = ssub.s32 %s42, 1
      %s48 = ssub.s32 %s42, 2
      %s55 = sadd.s32 1, %s50
      %p56 = scmp.ge.s32.totalorder %s55, 11
      %s57 = scalar_select %p56, 0, %s55
      %s58 = sadd.s32 1, %s49
      %s59 = scalar_select %p56, %s58, %s49
      %p60 = scmp.ge.s32.totalorder %s59, 2
      %s61 = scalar_select %p60, 0, %s59
      %s62 = smul.u32 %s49, 11
      %s63 = sadd.s32 %s62, %s50
      %s64 = sld [smem:[#allocation3 + %s63]]
      %s65 = smul.u32 %s61, 11
      %s66 = sadd.s32 %s65, %s57
      %s67 = sld [smem:[#allocation3 + %s66]]
      %s68 = ssub.s32 %s64, %s67
      %p69 = scmp.eq.s32.totalorder %s68, 0
      %s71 = sadd.s32 %s70, 1
      %s72 = scalar_select %p69, %s70, %s71
      %p75 = pneg %p69
      %p76 = scmp.eq.s32.totalorder %s42, 21
      %p77 = por %p75, %p76
      %p78 = scmp.ne.s32.totalorder %s70, %s73
      %p79 = scmp.eq.s32.totalorder %s42, 0
      %p80 = por %p78, %p79
      %p81 = scmp.ne.s32.totalorder %s70, %s73
      %p82 = scmp.eq.s32.totalorder %s47, 21
      %p83 = por %p81, %p82
      %p84 = scmp.ne.s32.totalorder %s73, %s74
      %p85 = scmp.eq.s32.totalorder %s47, 0
      %p86 = por %p84, %p85
      %p87 = scmp.ne.s32.totalorder %s73, %s74
      %p88 = scmp.eq.s32.totalorder %s48, 21
      %p89 = por %p87, %p88
      %p91 = scmp.ne.s32.totalorder %s74, %s90
      %p92 = scmp.eq.s32.totalorder %s48, 0
      %p93 = por %p91, %p92
      %s94 = smul.u32 %s49, 11
      %s95 = sadd.s32 %s94, %s50
      %s96 = sld [smem:[#allocation4 + %s95]]
      %s97 = smul.u32 %s61, 11
      %s98 = sadd.s32 %s97, %s57
      %s99 = sld [smem:[#allocation4 + %s98]]
      %s100 = ssub.s32 %s96, %s99
      %p101 = scmp.eq.s32.totalorder %s100, 0
      %s103 = sadd.s32 %s102, 1
      %s104 = scalar_select %p101, %s102, %s103
      %p107 = pneg %p101
      %p108 = scmp.eq.s32.totalorder %s42, 21
      %p109 = por %p107, %p108
      %p110 = scmp.ne.s32.totalorder %s102, %s105
      %p111 = scmp.eq.s32.totalorder %s42, 0
      %p112 = por %p110, %p111
      %p113 = scmp.ne.s32.totalorder %s102, %s105
      %p114 = scmp.eq.s32.totalorder %s47, 21
      %p115 = por %p113, %p114
      %p116 = scmp.ne.s32.totalorder %s105, %s106
      %p117 = scmp.eq.s32.totalorder %s47, 0
      %p118 = por %p116, %p117
      %p119 = scmp.ne.s32.totalorder %s105, %s106
      %p120 = scmp.eq.s32.totalorder %s48, 21
      %p121 = por %p119, %p120
      %p123 = scmp.ne.s32.totalorder %s106, %s122
      %p124 = scmp.eq.s32.totalorder %s48, 0
      %p125 = por %p123, %p124
      %s126 = smul.u32 %s49, 11
      %s127 = sadd.s32 %s126, %s50
      %s128 = sld [smem:[#allocation3 + %s127]]
      %s129 = smul.u32 %s61, 11
      %s130 = sadd.s32 %s129, %s57
      %s131 = sld [smem:[#allocation3 + %s130]]
      %s132 = ssub.s32 %s128, %s131
      %p133 = scmp.eq.s32.totalorder %s132, 0
      %s135 = sadd.s32 %s134, 1
      %s136 = scalar_select %p133, %s134, %s135
      %p139 = pneg %p133
      %p140 = scmp.eq.s32.totalorder %s42, 21
      %p141 = por %p139, %p140
      %p142 = scmp.ne.s32.totalorder %s134, %s137
      %p143 = scmp.eq.s32.totalorder %s42, 0
      %p144 = por %p142, %p143
      %p145 = scmp.ne.s32.totalorder %s134, %s137
      %p146 = scmp.eq.s32.totalorder %s47, 21
      %p147 = por %p145, %p146
      %p148 = scmp.ne.s32.totalorder %s137, %s138
      %p149 = scmp.eq.s32.totalorder %s47, 0
      %p150 = por %p148, %p149
      %p151 = scmp.ne.s32.totalorder %s137, %s138
      %p152 = scmp.eq.s32.totalorder %s48, 21
      %p153 = por %p151, %p152
      %p155 = scmp.ne.s32.totalorder %s138, %s154
      %p156 = scmp.eq.s32.totalorder %s48, 0
      %p157 = por %p155, %p156
      %p158 = scmp.le.s32.totalorder 1, %s42
      %p159 = scmp.lt.s32.totalorder %s42, 23
      %p160 = pnand %p158, %p159
      %p161 = pneg %p160
      // Predicated region
      $region9: #{tpu_custom_call.1} parent=5 // pred_check
        _
      $region10: #{tpu_custom_call.1} parent=5 // pred_check_branch
        %163 = sbr.rel (%p160) target = $region12
      $region11: #{tpu_custom_call.1} parent=5 // pred_region
        %s164 = ssub.s32 %s42, 1
      $region12: #{tpu_custom_call.1} parent=5 // pred_fallthru
        _
      %p165 = scmp.lt.s32.totalorder %s42, 22
      // Predicated region
      $region13: #{tpu_custom_call.1} parent=5 // pred_check
        %p166 = pneg %p165
      $region14: #{tpu_custom_call.1} parent=5 // pred_check_branch
        %168 = sbr.rel (%p166) target = $region16
      $region15: #{tpu_custom_call.1} parent=5 // pred_region
        // Predicated region
        $region17: #{tpu_custom_call.1} parent=15 // pred_check
          %p169 = pneg %p80
        $region18: #{tpu_custom_call.1} parent=15 // pred_check_branch
          %171 = sbr.rel (%p169) target = $region20
        $region19: #{tpu_custom_call.1} parent=15 // pred_region
          %s172 = sand.u32 %s70, 1
          %s173 = scalar_lea.sflag [#allocation9], %s172
          %s174 = sand.u32 %s70, 1
          %s175 = smul.addr %s174, 256
          %s176 = scalar_lea.vmem [#allocation8], %s175
          %s177 = smul.u32 %s49, 11
          %s178 = sadd.s32 %s177, %s50
          %s179 = sld [smem:[#allocation3 + %s178]]
          %s180 = smul.u32 64, %s179
          %s182 = ssub.s32 4096, 4096
          %183 = vsyncadd %s173, %s182
          %s184 = smul.addr %s180, 64
          %s185 = scalar_lea.hbm %s5, %s184
          %s186 = sshll.u32 %s176, 4
          %s187 = int_to_ptr.vmem [resolvable:$true] %s186
          %192 = dma.hbm_to_vmem [thread:$0]  %s185, 4096, %s187, %s173, 64, 64, 4
        $region20: #{tpu_custom_call.1} parent=15 // pred_fallthru
          _
        // Predicated region
        $region21: #{tpu_custom_call.1} parent=15 // pred_check
          %p193 = pneg %p112
        $region22: #{tpu_custom_call.1} parent=15 // pred_check_branch
          %195 = sbr.rel (%p193) target = $region24
        $region23: #{tpu_custom_call.1} parent=15 // pred_region
          %s196 = sand.u32 %s102, 1
          %s197 = scalar_lea.sflag [#allocation12], %s196
          %s198 = sand.u32 %s102, 1
          %s199 = smul.addr %s198, 64
          %s200 = scalar_lea.vmem [#allocation11], %s199
          %s201 = smul.u32 %s49, 11
          %s202 = sadd.s32 %s201, %s50
          %s203 = sld [smem:[#allocation4 + %s202]]
          %s205 = ssub.s32 1024, 1024
          %206 = vsyncadd %s197, %s205
          %s207 = smul.addr %s203, 16
          %s208 = smul.addr %s207, 64
          %s209 = scalar_lea.hbm %s6, %s208
          %s210 = sshll.u32 %s200, 4
          %s211 = int_to_ptr.vmem [resolvable:$true] %s210
          %216 = dma.hbm_to_vmem [thread:$0]  %s209, 1024, %s211, %s197, 64, 64, 4
        $region24: #{tpu_custom_call.1} parent=15 // pred_fallthru
          _
      $region16: #{tpu_custom_call.1} parent=5 // pred_fallthru
        _
      %p217 = scmp.le.s32.totalorder 1, %s42
      %p218 = scmp.lt.s32.totalorder %s42, 23
      %p219 = pnand %p217, %p218
      %p220 = pneg %p219
      // Predicated region
      $region25: #{tpu_custom_call.1} parent=5 // pred_check
        _
      $region26: #{tpu_custom_call.1} parent=5 // pred_check_branch
        %222 = sbr.rel (%p219) target = $region28
      $region27: #{tpu_custom_call.1} parent=5 // pred_region
        %s223 = ssub.s32 %s42, 1
        %s224 = sand.u32 %s73, 1
        %s225 = scalar_lea.sflag [#allocation9], %s224
        %s226 = sand.u32 %s73, 1
        %s227 = smul.addr %s226, 256
        %s228 = scalar_lea.vmem [#allocation8], %s227
        // Predicated region
        $region29: #{tpu_custom_call.1} parent=27 // pred_check
          %p229 = pneg %p86
        $region30: #{tpu_custom_call.1} parent=27 // pred_check_branch
          %231 = sbr.rel (%p229) target = $region32
        $region31: #{tpu_custom_call.1} parent=27 // pred_region
          %232 = dma.done %s225, 4096
        $region32: #{tpu_custom_call.1} parent=27 // pred_fallthru
          _
        %s233 = sand.u32 %s105, 1
        %s234 = scalar_lea.sflag [#allocation12], %s233
        %s235 = sand.u32 %s105, 1
        %s236 = smul.addr %s235, 64
        %s237 = scalar_lea.vmem [#allocation11], %s236
        // Predicated region
        $region33: #{tpu_custom_call.1} parent=27 // pred_check
          %p238 = pneg %p118
        $region34: #{tpu_custom_call.1} parent=27 // pred_check_branch
          %240 = sbr.rel (%p238) target = $region36
        $region35: #{tpu_custom_call.1} parent=27 // pred_region
          %241 = dma.done %s234, 1024
        $region36: #{tpu_custom_call.1} parent=27 // pred_fallthru
          _
        %s242 = sand.u32 %s73, 1
        %s243 = scalar_lea.sflag [#allocation9], %s242
        %s244 = sand.u32 %s73, 1
        %s245 = smul.addr %s244, 256
        %s246 = scalar_lea.vmem [#allocation8], %s245
        %p247 = pneg %p86
        %p248 = pneg %p83
        %s249 = sand.u32 %s105, 1
        %s250 = scalar_lea.sflag [#allocation12], %s249
        %s251 = sand.u32 %s105, 1
        %s252 = smul.addr %s251, 64
        %s253 = scalar_lea.vmem [#allocation11], %s252
        %p254 = pneg %p118
        %p255 = pneg %p115
        %p256 = pneg %p150
        %p257 = pneg %p147
        %s258 = sand.u32 %s137, 1
        %s259 = scalar_lea.sflag [#allocation10], %s258
        %s260 = sand.u32 %s137, 1
        %s261 = smul.addr %s260, 512
        %s262 = scalar_lea.vmem [#allocation13], %s261
        %s263 = smul.u32 %s51, 11
        %s264 = sadd.s32 %s263, %s52
        %s265 = sld [smem:[#allocation3 + %s264]]
        %s266 = smul.u32 64, %s265
        %s267 = smul.u32 %s51, 11
        %s268 = sadd.s32 %s267, %s52
        %s269 = sld [smem:[#allocation4 + %s268]]
        %s270 = smul.u32 %s51, 11
        %s271 = sadd.s32 %s270, %s52
        %s272 = sld [smem:[#allocation3 + %s271]]
        %s273 = smul.u32 64, %s272
        %s275 = smul.u32 %s51, 11
        %s276 = sadd.s32 %s275, %s52
        %s277 = sld [smem:[#allocation5 + %s276]]
        %p278 = scmp.eq.s32.totalorder %s277, 1
        // Predicated region
        $region37: #{tpu_custom_call.1} parent=27 // pred_check
          %p279 = pneg %p278
        $region38: #{tpu_custom_call.1} parent=27 // pred_check_branch
          %281 = sbr.rel (%p279) target = $region40
        $region39: #{tpu_custom_call.1} parent=27 // pred_region
          %s282 = sld [smem:[#allocation6 + %s276]]
          %s283 = sld [smem:[#allocation7 + %s276]]
          %p284 = scmp.eq.s32.totalorder %s282, 0
          %p285 = scmp.eq.s32.totalorder %s283, 256
          %v286 = vld [vmem:[%s228] sm:$0xf]
          %v287 = vld [vmem:[%s228 + $0x4] sm:$0xf]
          %v288 = vld [vmem:[%s228 + $0x8] sm:$0xf]
          %v289 = vld [vmem:[%s228 + $0xc] sm:$0xf]
          %v290 = vld [vmem:[%s228 + $0x10] sm:$0xf]
          %v291 = vld [vmem:[%s228 + $0x14] sm:$0xf]
          %v292 = vld [vmem:[%s228 + $0x18] sm:$0xf]
          %v293 = vld [vmem:[%s228 + $0x1c] sm:$0xf]
          %v294 = vld [vmem:[%s228 + $0x20] sm:$0xf]
          %v295 = vld [vmem:[%s228 + $0x24] sm:$0xf]
          %v296 = vld [vmem:[%s228 + $0x28] sm:$0xf]
          %v297 = vld [vmem:[%s228 + $0x2c] sm:$0xf]
          %v298 = vld [vmem:[%s228 + $0x30] sm:$0xf]
          %v299 = vld [vmem:[%s228 + $0x34] sm:$0xf]
          %v300 = vld [vmem:[%s228 + $0x38] sm:$0xf]
          %v301 = vld [vmem:[%s228 + $0x3c] sm:$0xf]
          %v302 = vld [vmem:[%s228 + $0x40] sm:$0xf]
          %v303 = vld [vmem:[%s228 + $0x44] sm:$0xf]
          %v304 = vld [vmem:[%s228 + $0x48] sm:$0xf]
          %v305 = vld [vmem:[%s228 + $0x4c] sm:$0xf]
          %v306 = vld [vmem:[%s228 + $0x50] sm:$0xf]
          %v307 = vld [vmem:[%s228 + $0x54] sm:$0xf]
          %v308 = vld [vmem:[%s228 + $0x58] sm:$0xf]
          %v309 = vld [vmem:[%s228 + $0x5c] sm:$0xf]
          %v310 = vld [vmem:[%s228 + $0x60] sm:$0xf]
          %v311 = vld [vmem:[%s228 + $0x64] sm:$0xf]
          %v312 = vld [vmem:[%s228 + $0x68] sm:$0xf]
          %v313 = vld [vmem:[%s228 + $0x6c] sm:$0xf]
          %v314 = vld [vmem:[%s228 + $0x70] sm:$0xf]
          %v315 = vld [vmem:[%s228 + $0x74] sm:$0xf]
          %v316 = vld [vmem:[%s228 + $0x78] sm:$0xf]
          %v317 = vld [vmem:[%s228 + $0x7c] sm:$0xf]
          %v318 = vld [vmem:[%s228 + $0x80] sm:$0xf]
          %v319 = vld [vmem:[%s228 + $0x84] sm:$0xf]
          %v320 = vld [vmem:[%s228 + $0x88] sm:$0xf]
          %v321 = vld [vmem:[%s228 + $0x8c] sm:$0xf]
          %v322 = vld [vmem:[%s228 + $0x90] sm:$0xf]
          %v323 = vld [vmem:[%s228 + $0x94] sm:$0xf]
          %v324 = vld [vmem:[%s228 + $0x98] sm:$0xf]
          %v325 = vld [vmem:[%s228 + $0x9c] sm:$0xf]
          %v326 = vld [vmem:[%s228 + $0xa0] sm:$0xf]
          %v327 = vld [vmem:[%s228 + $0xa4] sm:$0xf]
          %v328 = vld [vmem:[%s228 + $0xa8] sm:$0xf]
          %v329 = vld [vmem:[%s228 + $0xac] sm:$0xf]
          %v330 = vld [vmem:[%s228 + $0xb0] sm:$0xf]
          %v331 = vld [vmem:[%s228 + $0xb4] sm:$0xf]
          %v332 = vld [vmem:[%s228 + $0xb8] sm:$0xf]
          %v333 = vld [vmem:[%s228 + $0xbc] sm:$0xf]
          %v334 = vld [vmem:[%s228 + $0xc0] sm:$0xf]
          %v335 = vld [vmem:[%s228 + $0xc4] sm:$0xf]
          %v336 = vld [vmem:[%s228 + $0xc8] sm:$0xf]
          %v337 = vld [vmem:[%s228 + $0xcc] sm:$0xf]
          %v338 = vld [vmem:[%s228 + $0xd0] sm:$0xf]
          %v339 = vld [vmem:[%s228 + $0xd4] sm:$0xf]
          %v340 = vld [vmem:[%s228 + $0xd8] sm:$0xf]
          %v341 = vld [vmem:[%s228 + $0xdc] sm:$0xf]
          %v342 = vld [vmem:[%s228 + $0xe0] sm:$0xf]
          %v343 = vld [vmem:[%s228 + $0xe4] sm:$0xf]
          %v344 = vld [vmem:[%s228 + $0xe8] sm:$0xf]
          %v345 = vld [vmem:[%s228 + $0xec] sm:$0xf]
          %v346 = vld [vmem:[%s228 + $0xf0] sm:$0xf]
          %v347 = vld [vmem:[%s228 + $0xf4] sm:$0xf]
          %v348 = vld [vmem:[%s228 + $0xf8] sm:$0xf]
          %v349 = vld [vmem:[%s228 + $0xfc] sm:$0xf]
          %v350 = vld [vmem:[%s237] sm:$0xf]
          %v351 = vld [vmem:[%s237 + $0x4] sm:$0xf]
          %v352 = vld [vmem:[%s237 + $0x8] sm:$0xf]
          %v353 = vld [vmem:[%s237 + $0xc] sm:$0xf]
          %v354 = vld [vmem:[%s237 + $0x10] sm:$0xf]
          %v355 = vld [vmem:[%s237 + $0x14] sm:$0xf]
          %v356 = vld [vmem:[%s237 + $0x18] sm:$0xf]
          %v357 = vld [vmem:[%s237 + $0x1c] sm:$0xf]
          %v358 = vld [vmem:[%s237 + $0x20] sm:$0xf]
          %v359 = vld [vmem:[%s237 + $0x24] sm:$0xf]
          %v360 = vld [vmem:[%s237 + $0x28] sm:$0xf]
          %v361 = vld [vmem:[%s237 + $0x2c] sm:$0xf]
          %v362 = vld [vmem:[%s237 + $0x30] sm:$0xf]
          %v363 = vld [vmem:[%s237 + $0x34] sm:$0xf]
          %v364 = vld [vmem:[%s237 + $0x38] sm:$0xf]
          %v365 = vld [vmem:[%s237 + $0x3c] sm:$0xf]
          %v430 = vunpack.c.l.b16 %v286
          %v431 = vunpack.c.l.b16 %v287
          %v432 = vunpack.c.l.b16 %v288
          %v433 = vunpack.c.l.b16 %v289
          %v434 = vunpack.c.l.b16 %v290
          %v435 = vunpack.c.l.b16 %v291
          %v436 = vunpack.c.l.b16 %v292
          %v437 = vunpack.c.l.b16 %v293
          %v438 = vunpack.c.l.b16 %v294
          %v439 = vunpack.c.l.b16 %v295
          %v440 = vunpack.c.l.b16 %v296
          %v441 = vunpack.c.l.b16 %v297
          %v442 = vunpack.c.l.b16 %v298
          %v443 = vunpack.c.l.b16 %v299
          %v444 = vunpack.c.l.b16 %v300
          %v445 = vunpack.c.l.b16 %v301
          %v446 = vunpack.c.l.b16 %v302
          %v447 = vunpack.c.l.b16 %v303
          %v448 = vunpack.c.l.b16 %v304
          %v449 = vunpack.c.l.b16 %v305
          %v450 = vunpack.c.l.b16 %v306
          %v451 = vunpack.c.l.b16 %v307
          %v452 = vunpack.c.l.b16 %v308
          %v453 = vunpack.c.l.b16 %v309
          %v454 = vunpack.c.l.b16 %v310
          %v455 = vunpack.c.l.b16 %v311
          %v456 = vunpack.c.l.b16 %v312
          %v457 = vunpack.c.l.b16 %v313
          %v458 = vunpack.c.l.b16 %v314
          %v459 = vunpack.c.l.b16 %v315
          %v460 = vunpack.c.l.b16 %v316
          %v461 = vunpack.c.l.b16 %v317
          %v462 = vunpack.c.l.b16 %v318
          %v463 = vunpack.c.l.b16 %v319
          %v464 = vunpack.c.l.b16 %v320
          %v465 = vunpack.c.l.b16 %v321
          %v466 = vunpack.c.l.b16 %v322
          %v467 = vunpack.c.l.b16 %v323
          %v468 = vunpack.c.l.b16 %v324
          %v469 = vunpack.c.l.b16 %v325
          %v470 = vunpack.c.l.b16 %v326
          %v471 = vunpack.c.l.b16 %v327
          %v472 = vunpack.c.l.b16 %v328
          %v473 = vunpack.c.l.b16 %v329
          %v474 = vunpack.c.l.b16 %v330
          %v475 = vunpack.c.l.b16 %v331
          %v476 = vunpack.c.l.b16 %v332
          %v477 = vunpack.c.l.b16 %v333
          %v478 = vunpack.c.l.b16 %v334
          %v479 = vunpack.c.l.b16 %v335
          %v480 = vunpack.c.l.b16 %v336
          %v481 = vunpack.c.l.b16 %v337
          %v482 = vunpack.c.l.b16 %v338
          %v483 = vunpack.c.l.b16 %v339
          %v484 = vunpack.c.l.b16 %v340
          %v485 = vunpack.c.l.b16 %v341
          %v486 = vunpack.c.l.b16 %v342
          %v487 = vunpack.c.l.b16 %v343
          %v488 = vunpack.c.l.b16 %v344
          %v489 = vunpack.c.l.b16 %v345
          %v490 = vunpack.c.l.b16 %v346
          %v491 = vunpack.c.l.b16 %v347
          %v492 = vunpack.c.l.b16 %v348
          %v493 = vunpack.c.l.b16 %v349
          %v494 = vpack.c.b16 %v431, %v430
          %v495 = vpack.c.b16 %v433, %v432
          %v496 = vpack.c.b16 %v435, %v434
          %v497 = vpack.c.b16 %v437, %v436
          %v498 = vpack.c.b16 %v439, %v438
          %v499 = vpack.c.b16 %v441, %v440
          %v500 = vpack.c.b16 %v443, %v442
          %v501 = vpack.c.b16 %v445, %v444
          %v502 = vpack.c.b16 %v447, %v446
          %v503 = vpack.c.b16 %v449, %v448
          %v504 = vpack.c.b16 %v451, %v450
          %v505 = vpack.c.b16 %v453, %v452
          %v506 = vpack.c.b16 %v455, %v454
          %v507 = vpack.c.b16 %v457, %v456
          %v508 = vpack.c.b16 %v459, %v458
          %v509 = vpack.c.b16 %v461, %v460
          %v510 = vpack.c.b16 %v463, %v462
          %v511 = vpack.c.b16 %v465, %v464
          %v512 = vpack.c.b16 %v467, %v466
          %v513 = vpack.c.b16 %v469, %v468
          %v514 = vpack.c.b16 %v471, %v470
          %v515 = vpack.c.b16 %v473, %v472
          %v516 = vpack.c.b16 %v475, %v474
          %v517 = vpack.c.b16 %v477, %v476
          %v518 = vpack.c.b16 %v479, %v478
          %v519 = vpack.c.b16 %v481, %v480
          %v520 = vpack.c.b16 %v483, %v482
          %v521 = vpack.c.b16 %v485, %v484
          %v522 = vpack.c.b16 %v487, %v486
          %v523 = vpack.c.b16 %v489, %v488
          %v524 = vpack.c.b16 %v491, %v490
          %v525 = vpack.c.b16 %v493, %v492
          %v574 = vunpack.c.l.b16 %v350
          %v575 = vunpack.c.l.b16 %v351
          %v576 = vunpack.c.l.b16 %v352
          %v577 = vunpack.c.l.b16 %v353
          %v578 = vunpack.c.l.b16 %v354
          %v579 = vunpack.c.l.b16 %v355
          %v580 = vunpack.c.l.b16 %v356
          %v581 = vunpack.c.l.b16 %v357
          %v582 = vunpack.c.l.b16 %v358
          %v583 = vunpack.c.l.b16 %v359
          %v584 = vunpack.c.l.b16 %v360
          %v585 = vunpack.c.l.b16 %v361
          %v586 = vunpack.c.l.b16 %v362
          %v587 = vunpack.c.l.b16 %v363
          %v588 = vunpack.c.l.b16 %v364
          %v589 = vunpack.c.l.b16 %v365
          %v590 = vpack.c.b16 %v575, %v574
          %v591 = vpack.c.b16 %v577, %v576
          %v592 = vpack.c.b16 %v579, %v578
          %v593 = vpack.c.b16 %v581, %v580
          %v594 = vpack.c.b16 %v583, %v582
          %v595 = vpack.c.b16 %v585, %v584
          %v596 = vpack.c.b16 %v587, %v586
          %v597 = vpack.c.b16 %v589, %v588
          %606 = vmatprep.subr.bf16.mxu0 0
          %607 = vmatpush1.bf16.msra.mxu0 %v590
          %608 = vmatprep.subr.bf16.mxu0 0
          %609 = vmatpush1.bf16.msra.mxu0 %v591
          %610 = vmatprep.subr.bf16.mxu0 0
          %611 = vmatpush1.bf16.msra.mxu0 %v592
          %612 = vmatprep.subr.bf16.mxu0 0
          %613 = vmatpush1.bf16.msra.mxu0 %v593
          %614 = vmatprep.subr.bf16.mxu0 0
          %615 = vmatpush1.bf16.msra.mxu0 %v594
          %616 = vmatprep.subr.bf16.mxu0 0
          %617 = vmatpush1.bf16.msra.mxu0 %v595
          %618 = vmatprep.subr.bf16.mxu0 0
          %619 = vmatpush1.bf16.msra.mxu0 %v596
          %620 = vmatprep.subr.bf16.mxu0 0
          %621 = vmatpush1.bf16.msra.mxu0 %v597
          %622 = vmatprep.subr.bf16.mxu0 0
          %623 = vmatpush1.bf16.msra.mxu0 0
          %624 = vmatprep.subr.bf16.mxu0 0
          %625 = vmatpush1.bf16.msra.mxu0 0
          %626 = vmatprep.subr.bf16.mxu0 0
          %627 = vmatpush1.bf16.msra.mxu0 0
          %628 = vmatprep.subr.bf16.mxu0 0
          %629 = vmatpush1.bf16.msra.mxu0 0
          %630 = vmatprep.subr.bf16.mxu0 0
          %631 = vmatpush1.bf16.msra.mxu0 0
          %632 = vmatprep.subr.bf16.mxu0 0
          %633 = vmatpush1.bf16.msra.mxu0 0
          %634 = vmatprep.subr.bf16.mxu0 0
          %635 = vmatpush1.bf16.msra.mxu0 0
          %636 = vmatprep.subr.bf16.mxu0 0
          %637 = vmatpush1.bf16.msra.mxu0 0
          %638 = vmatprep.mubr.bf16.mxu0 0
          %639 = vmatmul.mubr.bf16.gmra.mrb[0].mxu0 %v494
          %v640 = vpop.f32.mrb[0].mxu0
          %v641 = vadd.f32 0.0, %v640
          %v642 = vpop.f32.mrb[0].mxu0
          %v643 = vpop.f32.mrb[0].mxu0
          %v644 = vadd.f32 0.0, %v643
          %v645 = vpop.f32.mrb[0].mxu0
          %646 = vmatprep.mubr.bf16.mxu0 0
          %647 = vmatmul.mubr.bf16.gmra.mrb[0].mxu0 %v495
          %v648 = vpop.f32.mrb[0].mxu0
          %v649 = vadd.f32 0.0, %v648
          %v650 = vpop.f32.mrb[0].mxu0
          %v651 = vpop.f32.mrb[0].mxu0
          %v652 = vadd.f32 0.0, %v651
          %v653 = vpop.f32.mrb[0].mxu0
          %654 = vmatprep.mubr.bf16.mxu0 0
          %655 = vmatmul.mubr.bf16.gmra.mrb[0].mxu0 %v496
          %v656 = vpop.f32.mrb[0].mxu0
          %v657 = vadd.f32 0.0, %v656
          %v658 = vpop.f32.mrb[0].mxu0
          %v659 = vpop.f32.mrb[0].mxu0
          %v660 = vadd.f32 0.0, %v659
          %v661 = vpop.f32.mrb[0].mxu0
          %662 = vmatprep.mubr.bf16.mxu0 0
          %663 = vmatmul.mubr.bf16.gmra.mrb[0].mxu0 %v497
          %v664 = vpop.f32.mrb[0].mxu0
          %v665 = vadd.f32 0.0, %v664
          %v666 = vpop.f32.mrb[0].mxu0
          %v667 = vpop.f32.mrb[0].mxu0
          %v668 = vadd.f32 0.0, %v667
          %v669 = vpop.f32.mrb[0].mxu0
          %670 = vmatprep.mubr.bf16.mxu0 0
          %671 = vmatmul.mubr.bf16.gmra.mrb[0].mxu0 %v498
          %v672 = vpop.f32.mrb[0].mxu0
          %v673 = vadd.f32 0.0, %v672
          %v674 = vpop.f32.mrb[0].mxu0
          %v675 = vpop.f32.mrb[0].mxu0
          %v676 = vadd.f32 0.0, %v675
          %v677 = vpop.f32.mrb[0].mxu0
          %678 = vmatprep.mubr.bf16.mxu0 0
          %679 = vmatmul.mubr.bf16.gmra.mrb[0].mxu0 %v499
          %v680 = vpop.f32.mrb[0].mxu0
          %v681 = vadd.f32 0.0, %v680
          %v682 = vpop.f32.mrb[0].mxu0
          %v683 = vpop.f32.mrb[0].mxu0
          %v684 = vadd.f32 0.0, %v683
          %v685 = vpop.f32.mrb[0].mxu0
          %686 = vmatprep.mubr.bf16.mxu0 0
          %687 = vmatmul.mubr.bf16.gmra.mrb[0].mxu0 %v500
          %v688 = vpop.f32.mrb[0].mxu0
          %v689 = vadd.f32 0.0, %v688
          %v690 = vpop.f32.mrb[0].mxu0
          %v691 = vpop.f32.mrb[0].mxu0
          %v692 = vadd.f32 0.0, %v691
          %v693 = vpop.f32.mrb[0].mxu0
          %694 = vmatprep.mubr.bf16.mxu0 0
          %695 = vmatmul.mubr.bf16.gmra.mrb[0].mxu0 %v501
          %v696 = vpop.f32.mrb[0].mxu0
          %v697 = vadd.f32 0.0, %v696
          %v698 = vpop.f32.mrb[0].mxu0
          %v699 = vpop.f32.mrb[0].mxu0
          %v700 = vadd.f32 0.0, %v699
          %v701 = vpop.f32.mrb[0].mxu0
          %702 = vmatprep.mubr.bf16.mxu0 0
          %703 = vmatmul.mubr.bf16.gmra.mrb[0].mxu0 %v502
          %v704 = vpop.f32.mrb[0].mxu0
          %v705 = vadd.f32 0.0, %v704
          %v706 = vpop.f32.mrb[0].mxu0
          %v707 = vpop.f32.mrb[0].mxu0
          %v708 = vadd.f32 0.0, %v707
          %v709 = vpop.f32.mrb[0].mxu0
          %710 = vmatprep.mubr.bf16.mxu0 0
          %711 = vmatmul.mubr.bf16.gmra.mrb[0].mxu0 %v503
          %v712 = vpop.f32.mrb[0].mxu0
          %v713 = vadd.f32 0.0, %v712
          %v714 = vpop.f32.mrb[0].mxu0
          %v715 = vpop.f32.mrb[0].mxu0
          %v716 = vadd.f32 0.0, %v715
          %v717 = vpop.f32.mrb[0].mxu0
          %718 = vmatprep.mubr.bf16.mxu0 0
          %719 = vmatmul.mubr.bf16.gmra.mrb[0].mxu0 %v504
          %v720 = vpop.f32.mrb[0].mxu0
          %v721 = vadd.f32 0.0, %v720
          %v722 = vpop.f32.mrb[0].mxu0
          %v723 = vpop.f32.mrb[0].mxu0
          %v724 = vadd.f32 0.0, %v723
          %v725 = vpop.f32.mrb[0].mxu0
          %726 = vmatprep.mubr.bf16.mxu0 0
          %727 = vmatmul.mubr.bf16.gmra.mrb[0].mxu0 %v505
          %v728 = vpop.f32.mrb[0].mxu0
          %v729 = vadd.f32 0.0, %v728
          %v730 = vpop.f32.mrb[0].mxu0
          %v731 = vpop.f32.mrb[0].mxu0
          %v732 = vadd.f32 0.0, %v731
          %v733 = vpop.f32.mrb[0].mxu0
          %734 = vmatprep.mubr.bf16.mxu0 0
          %735 = vmatmul.mubr.bf16.gmra.mrb[0].mxu0 %v506
          %v736 = vpop.f32.mrb[0].mxu0
          %v737 = vadd.f32 0.0, %v736
          %v738 = vpop.f32.mrb[0].mxu0
          %v739 = vpop.f32.mrb[0].mxu0
          %v740 = vadd.f32 0.0, %v739
          %v741 = vpop.f32.mrb[0].mxu0
          %742 = vmatprep.mubr.bf16.mxu0 0
          %743 = vmatmul.mubr.bf16.gmra.mrb[0].mxu0 %v507
          %v744 = vpop.f32.mrb[0].mxu0
          %v745 = vadd.f32 0.0, %v744
          %v746 = vpop.f32.mrb[0].mxu0
          %v747 = vpop.f32.mrb[0].mxu0
          %v748 = vadd.f32 0.0, %v747
          %v749 = vpop.f32.mrb[0].mxu0
          %750 = vmatprep.mubr.bf16.mxu0 0
          %751 = vmatmul.mubr.bf16.gmra.mrb[0].mxu0 %v508
          %v752 = vpop.f32.mrb[0].mxu0
          %v753 = vadd.f32 0.0, %v752
          %v754 = vpop.f32.mrb[0].mxu0
          %v755 = vpop.f32.mrb[0].mxu0
          %v756 = vadd.f32 0.0, %v755
          %v757 = vpop.f32.mrb[0].mxu0
          %758 = vmatprep.mubr.bf16.mxu0 0
          %759 = vmatmul.mubr.bf16.gmra.mrb[0].mxu0 %v509
          %v760 = vpop.f32.mrb[0].mxu0
          %v761 = vadd.f32 0.0, %v760
          %v762 = vpop.f32.mrb[0].mxu0
          %v763 = vpop.f32.mrb[0].mxu0
          %v764 = vadd.f32 0.0, %v763
          %v765 = vpop.f32.mrb[0].mxu0
          %766 = vmatprep.mubr.bf16.mxu0 0
          %767 = vmatmul.mubr.bf16.gmra.mrb[0].mxu0 %v510
          %v768 = vpop.f32.mrb[0].mxu0
          %v769 = vadd.f32 0.0, %v768
          %v770 = vpop.f32.mrb[0].mxu0
          %v771 = vpop.f32.mrb[0].mxu0
          %v772 = vadd.f32 0.0, %v771
          %v773 = vpop.f32.mrb[0].mxu0
          %774 = vmatprep.mubr.bf16.mxu0 0
          %775 = vmatmul.mubr.bf16.gmra.mrb[0].mxu0 %v511
          %v776 = vpop.f32.mrb[0].mxu0
          %v777 = vadd.f32 0.0, %v776
          %v778 = vpop.f32.mrb[0].mxu0
          %v779 = vpop.f32.mrb[0].mxu0
          %v780 = vadd.f32 0.0, %v779
          %v781 = vpop.f32.mrb[0].mxu0
          %782 = vmatprep.mubr.bf16.mxu0 0
          %783 = vmatmul.mubr.bf16.gmra.mrb[0].mxu0 %v512
          %v784 = vpop.f32.mrb[0].mxu0
          %v785 = vadd.f32 0.0, %v784
          %v786 = vpop.f32.mrb[0].mxu0
          %v787 = vpop.f32.mrb[0].mxu0
          %v788 = vadd.f32 0.0, %v787
          %v789 = vpop.f32.mrb[0].mxu0
          %790 = vmatprep.mubr.bf16.mxu0 0
          %791 = vmatmul.mubr.bf16.gmra.mrb[0].mxu0 %v513
          %v792 = vpop.f32.mrb[0].mxu0
          %v793 = vadd.f32 0.0, %v792
          %v794 = vpop.f32.mrb[0].mxu0
          %v795 = vpop.f32.mrb[0].mxu0
          %v796 = vadd.f32 0.0, %v795
          %v797 = vpop.f32.mrb[0].mxu0
          %798 = vmatprep.mubr.bf16.mxu0 0
          %799 = vmatmul.mubr.bf16.gmra.mrb[0].mxu0 %v514
          %v800 = vpop.f32.mrb[0].mxu0
          %v801 = vadd.f32 0.0, %v800
          %v802 = vpop.f32.mrb[0].mxu0
          %v803 = vpop.f32.mrb[0].mxu0
          %v804 = vadd.f32 0.0, %v803
          %v805 = vpop.f32.mrb[0].mxu0
          %806 = vmatprep.mubr.bf16.mxu0 0
          %807 = vmatmul.mubr.bf16.gmra.mrb[0].mxu0 %v515
          %v808 = vpop.f32.mrb[0].mxu0
          %v809 = vadd.f32 0.0, %v808
          %v810 = vpop.f32.mrb[0].mxu0
          %v811 = vpop.f32.mrb[0].mxu0
          %v812 = vadd.f32 0.0, %v811
          %v813 = vpop.f32.mrb[0].mxu0
          %814 = vmatprep.mubr.bf16.mxu0 0
          %815 = vmatmul.mubr.bf16.gmra.mrb[0].mxu0 %v516
          %v816 = vpop.f32.mrb[0].mxu0
          %v817 = vadd.f32 0.0, %v816
          %v818 = vpop.f32.mrb[0].mxu0
          %v819 = vpop.f32.mrb[0].mxu0
          %v820 = vadd.f32 0.0, %v819
          %v821 = vpop.f32.mrb[0].mxu0
          %822 = vmatprep.mubr.bf16.mxu0 0
          %823 = vmatmul.mubr.bf16.gmra.mrb[0].mxu0 %v517
          %v824 = vpop.f32.mrb[0].mxu0
          %v825 = vadd.f32 0.0, %v824
          %v826 = vpop.f32.mrb[0].mxu0
          %v827 = vpop.f32.mrb[0].mxu0
          %v828 = vadd.f32 0.0, %v827
          %v829 = vpop.f32.mrb[0].mxu0
          %830 = vmatprep.mubr.bf16.mxu0 0
          %831 = vmatmul.mubr.bf16.gmra.mrb[0].mxu0 %v518
          %v832 = vpop.f32.mrb[0].mxu0
          %v833 = vadd.f32 0.0, %v832
          %v834 = vpop.f32.mrb[0].mxu0
          %v835 = vpop.f32.mrb[0].mxu0
          %v836 = vadd.f32 0.0, %v835
          %v837 = vpop.f32.mrb[0].mxu0
          %838 = vmatprep.mubr.bf16.mxu0 0
          %839 = vmatmul.mubr.bf16.gmra.mrb[0].mxu0 %v519
          %v840 = vpop.f32.mrb[0].mxu0
          %v841 = vadd.f32 0.0, %v840
          %v842 = vpop.f32.mrb[0].mxu0
          %v843 = vpop.f32.mrb[0].mxu0
          %v844 = vadd.f32 0.0, %v843
          %v845 = vpop.f32.mrb[0].mxu0
          %846 = vmatprep.mubr.bf16.mxu0 0
          %847 = vmatmul.mubr.bf16.gmra.mrb[0].mxu0 %v520
          %v848 = vpop.f32.mrb[0].mxu0
          %v849 = vadd.f32 0.0, %v848
          %v850 = vpop.f32.mrb[0].mxu0
          %v851 = vpop.f32.mrb[0].mxu0
          %v852 = vadd.f32 0.0, %v851
          %v853 = vpop.f32.mrb[0].mxu0
          %854 = vmatprep.mubr.bf16.mxu0 0
          %855 = vmatmul.mubr.bf16.gmra.mrb[0].mxu0 %v521
          %v856 = vpop.f32.mrb[0].mxu0
          %v857 = vadd.f32 0.0, %v856
          %v858 = vpop.f32.mrb[0].mxu0
          %v859 = vpop.f32.mrb[0].mxu0
          %v860 = vadd.f32 0.0, %v859
          %v861 = vpop.f32.mrb[0].mxu0
          %862 = vmatprep.mubr.bf16.mxu0 0
          %863 = vmatmul.mubr.bf16.gmra.mrb[0].mxu0 %v522
          %v864 = vpop.f32.mrb[0].mxu0
          %v865 = vadd.f32 0.0, %v864
          %v866 = vpop.f32.mrb[0].mxu0
          %v867 = vpop.f32.mrb[0].mxu0
          %v868 = vadd.f32 0.0, %v867
          %v869 = vpop.f32.mrb[0].mxu0
          %870 = vmatprep.mubr.bf16.mxu0 0
          %871 = vmatmul.mubr.bf16.gmra.mrb[0].mxu0 %v523
          %v872 = vpop.f32.mrb[0].mxu0
          %v873 = vadd.f32 0.0, %v872
          %v874 = vpop.f32.mrb[0].mxu0
          %v875 = vpop.f32.mrb[0].mxu0
          %v876 = vadd.f32 0.0, %v875
          %v877 = vpop.f32.mrb[0].mxu0
          %878 = vmatprep.mubr.bf16.mxu0 0
          %879 = vmatmul.mubr.bf16.gmra.mrb[0].mxu0 %v524
          %v880 = vpop.f32.mrb[0].mxu0
          %v881 = vadd.f32 0.0, %v880
          %v882 = vpop.f32.mrb[0].mxu0
          %v883 = vpop.f32.mrb[0].mxu0
          %v884 = vadd.f32 0.0, %v883
          %v885 = vpop.f32.mrb[0].mxu0
          %886 = vmatprep.mubr.bf16.mxu0 0
          %887 = vmatmul.mubr.bf16.gmra.mrb[0].mxu0 %v525
          %v888 = vpop.f32.mrb[0].mxu0
          %v889 = vadd.f32 0.0, %v888
          %v890 = vpop.f32.mrb[0].mxu0
          %v891 = vpop.f32.mrb[0].mxu0
          %v892 = vadd.f32 0.0, %v891
          %v893 = vpop.f32.mrb[0].mxu0
          %894 = vdwg.mxu0
          %p895 = pnand %p284, %p285
          %p896 = pneg %p895
          // Predicated region
          $region41: #{tpu_custom_call.1} parent=39 // pred_check
            _
          $region42: #{tpu_custom_call.1} parent=39 // pred_check_branch
            %898 = sbr.rel (%p895) target = $region44
          $region43: #{tpu_custom_call.1} parent=39 // pred_region
            %899 = vst [vmem:[%s262] sm:$0xff] %v641
            %900 = vst [vmem:[%s262 + $0x8] sm:$0xff] %v644
            %901 = vst [vmem:[%s262 + $0x10] sm:$0xff] %v649
            %902 = vst [vmem:[%s262 + $0x18] sm:$0xff] %v652
            %903 = vst [vmem:[%s262 + $0x20] sm:$0xff] %v657
            %904 = vst [vmem:[%s262 + $0x28] sm:$0xff] %v660
            %905 = vst [vmem:[%s262 + $0x30] sm:$0xff] %v665
            %906 = vst [vmem:[%s262 + $0x38] sm:$0xff] %v668
            %907 = vst [vmem:[%s262 + $0x40] sm:$0xff] %v673
            %908 = vst [vmem:[%s262 + $0x48] sm:$0xff] %v676
            %909 = vst [vmem:[%s262 + $0x50] sm:$0xff] %v681
            %910 = vst [vmem:[%s262 + $0x58] sm:$0xff] %v684
            %911 = vst [vmem:[%s262 + $0x60] sm:$0xff] %v689
            %912 = vst [vmem:[%s262 + $0x68] sm:$0xff] %v692
            %913 = vst [vmem:[%s262 + $0x70] sm:$0xff] %v697
            %914 = vst [vmem:[%s262 + $0x78] sm:$0xff] %v700
            %915 = vst [vmem:[%s262 + $0x80] sm:$0xff] %v705
            %916 = vst [vmem:[%s262 + $0x88] sm:$0xff] %v708
            %917 = vst [vmem:[%s262 + $0x90] sm:$0xff] %v713
            %918 = vst [vmem:[%s262 + $0x98] sm:$0xff] %v716
            %919 = vst [vmem:[%s262 + $0xa0] sm:$0xff] %v721
            %920 = vst [vmem:[%s262 + $0xa8] sm:$0xff] %v724
            %921 = vst [vmem:[%s262 + $0xb0] sm:$0xff] %v729
            %922 = vst [vmem:[%s262 + $0xb8] sm:$0xff] %v732
            %923 = vst [vmem:[%s262 + $0xc0] sm:$0xff] %v737
            %924 = vst [vmem:[%s262 + $0xc8] sm:$0xff] %v740
            %925 = vst [vmem:[%s262 + $0xd0] sm:$0xff] %v745
            %926 = vst [vmem:[%s262 + $0xd8] sm:$0xff] %v748
            %927 = vst [vmem:[%s262 + $0xe0] sm:$0xff] %v753
            %928 = vst [vmem:[%s262 + $0xe8] sm:$0xff] %v756
            %929 = vst [vmem:[%s262 + $0xf0] sm:$0xff] %v761
            %930 = vst [vmem:[%s262 + $0xf8] sm:$0xff] %v764
            %931 = vst [vmem:[%s262 + $0x100] sm:$0xff] %v769
            %932 = vst [vmem:[%s262 + $0x108] sm:$0xff] %v772
            %933 = vst [vmem:[%s262 + $0x110] sm:$0xff] %v777
            %934 = vst [vmem:[%s262 + $0x118] sm:$0xff] %v780
            %935 = vst [vmem:[%s262 + $0x120] sm:$0xff] %v785
            %936 = vst [vmem:[%s262 + $0x128] sm:$0xff] %v788
            %937 = vst [vmem:[%s262 + $0x130] sm:$0xff] %v793
            %938 = vst [vmem:[%s262 + $0x138] sm:$0xff] %v796
            %939 = vst [vmem:[%s262 + $0x140] sm:$0xff] %v801
            %940 = vst [vmem:[%s262 + $0x148] sm:$0xff] %v804
            %941 = vst [vmem:[%s262 + $0x150] sm:$0xff] %v809
            %942 = vst [vmem:[%s262 + $0x158] sm:$0xff] %v812
            %943 = vst [vmem:[%s262 + $0x160] sm:$0xff] %v817
            %944 = vst [vmem:[%s262 + $0x168] sm:$0xff] %v820
            %945 = vst [vmem:[%s262 + $0x170] sm:$0xff] %v825
            %946 = vst [vmem:[%s262 + $0x178] sm:$0xff] %v828
            %947 = vst [vmem:[%s262 + $0x180] sm:$0xff] %v833
            %948 = vst [vmem:[%s262 + $0x188] sm:$0xff] %v836
            %949 = vst [vmem:[%s262 + $0x190] sm:$0xff] %v841
            %950 = vst [vmem:[%s262 + $0x198] sm:$0xff] %v844
            %951 = vst [vmem:[%s262 + $0x1a0] sm:$0xff] %v849
            %952 = vst [vmem:[%s262 + $0x1a8] sm:$0xff] %v852
            %953 = vst [vmem:[%s262 + $0x1b0] sm:$0xff] %v857
            %954 = vst [vmem:[%s262 + $0x1b8] sm:$0xff] %v860
            %955 = vst [vmem:[%s262 + $0x1c0] sm:$0xff] %v865
            %956 = vst [vmem:[%s262 + $0x1c8] sm:$0xff] %v868
            %957 = vst [vmem:[%s262 + $0x1d0] sm:$0xff] %v873
            %958 = vst [vmem:[%s262 + $0x1d8] sm:$0xff] %v876
            %959 = vst [vmem:[%s262 + $0x1e0] sm:$0xff] %v881
            %960 = vst [vmem:[%s262 + $0x1e8] sm:$0xff] %v884
            %961 = vst [vmem:[%s262 + $0x1f0] sm:$0xff] %v889
            %962 = vst [vmem:[%s262 + $0x1f8] sm:$0xff] %v892
          $region44: #{tpu_custom_call.1} parent=39 // pred_fallthru
            _
          %p963 = pneg %p896
          // Predicated region
          $region45: #{tpu_custom_call.1} parent=39 // pred_check
            _
          $region46: #{tpu_custom_call.1} parent=39 // pred_check_branch
            %965 = sbr.rel (%p896) target = $region48
          $region47: #{tpu_custom_call.1} parent=39 // pred_region
            // Predicated region
            $region49: #{tpu_custom_call.1} parent=47 // pred_check
              %p966 = pneg %p284
            $region50: #{tpu_custom_call.1} parent=47 // pred_check_branch
              %968 = sbr.rel (%p966) target = $region52
            $region51: #{tpu_custom_call.1} parent=47 // pred_region
              %969 = vst [vmem:[%s262] sm:$0xff] 0.0
              %970 = vst [vmem:[%s262 + $0x8] sm:$0xff] 0.0
              %971 = vst [vmem:[%s262 + $0x10] sm:$0xff] 0.0
              %972 = vst [vmem:[%s262 + $0x18] sm:$0xff] 0.0
              %973 = vst [vmem:[%s262 + $0x20] sm:$0xff] 0.0
              %974 = vst [vmem:[%s262 + $0x28] sm:$0xff] 0.0
              %975 = vst [vmem:[%s262 + $0x30] sm:$0xff] 0.0
              %976 = vst [vmem:[%s262 + $0x38] sm:$0xff] 0.0
              %977 = vst [vmem:[%s262 + $0x40] sm:$0xff] 0.0
              %978 = vst [vmem:[%s262 + $0x48] sm:$0xff] 0.0
              %979 = vst [vmem:[%s262 + $0x50] sm:$0xff] 0.0
              %980 = vst [vmem:[%s262 + $0x58] sm:$0xff] 0.0
              %981 = vst [vmem:[%s262 + $0x60] sm:$0xff] 0.0
              %982 = vst [vmem:[%s262 + $0x68] sm:$0xff] 0.0
              %983 = vst [vmem:[%s262 + $0x70] sm:$0xff] 0.0
              %984 = vst [vmem:[%s262 + $0x78] sm:$0xff] 0.0
              %985 = vst [vmem:[%s262 + $0x80] sm:$0xff] 0.0
              %986 = vst [vmem:[%s262 + $0x88] sm:$0xff] 0.0
              %987 = vst [vmem:[%s262 + $0x90] sm:$0xff] 0.0
              %988 = vst [vmem:[%s262 + $0x98] sm:$0xff] 0.0
              %989 = vst [vmem:[%s262 + $0xa0] sm:$0xff] 0.0
              %990 = vst [vmem:[%s262 + $0xa8] sm:$0xff] 0.0
              %991 = vst [vmem:[%s262 + $0xb0] sm:$0xff] 0.0
              %992 = vst [vmem:[%s262 + $0xb8] sm:$0xff] 0.0
              %993 = vst [vmem:[%s262 + $0xc0] sm:$0xff] 0.0
              %994 = vst [vmem:[%s262 + $0xc8] sm:$0xff] 0.0
              %995 = vst [vmem:[%s262 + $0xd0] sm:$0xff] 0.0
              %996 = vst [vmem:[%s262 + $0xd8] sm:$0xff] 0.0
              %997 = vst [vmem:[%s262 + $0xe0] sm:$0xff] 0.0
              %998 = vst [vmem:[%s262 + $0xe8] sm:$0xff] 0.0
              %999 = vst [vmem:[%s262 + $0xf0] sm:$0xff] 0.0
              %1000 = vst [vmem:[%s262 + $0xf8] sm:$0xff] 0.0
              %1001 = vst [vmem:[%s262 + $0x100] sm:$0xff] 0.0
              %1002 = vst [vmem:[%s262 + $0x108] sm:$0xff] 0.0
              %1003 = vst [vmem:[%s262 + $0x110] sm:$0xff] 0.0
              %1004 = vst [vmem:[%s262 + $0x118] sm:$0xff] 0.0
              %1005 = vst [vmem:[%s262 + $0x120] sm:$0xff] 0.0
              %1006 = vst [vmem:[%s262 + $0x128] sm:$0xff] 0.0
              %1007 = vst [vmem:[%s262 + $0x130] sm:$0xff] 0.0
              %1008 = vst [vmem:[%s262 + $0x138] sm:$0xff] 0.0
              %1009 = vst [vmem:[%s262 + $0x140] sm:$0xff] 0.0
              %1010 = vst [vmem:[%s262 + $0x148] sm:$0xff] 0.0
              %1011 = vst [vmem:[%s262 + $0x150] sm:$0xff] 0.0
              %1012 = vst [vmem:[%s262 + $0x158] sm:$0xff] 0.0
              %1013 = vst [vmem:[%s262 + $0x160] sm:$0xff] 0.0
              %1014 = vst [vmem:[%s262 + $0x168] sm:$0xff] 0.0
              %1015 = vst [vmem:[%s262 + $0x170] sm:$0xff] 0.0
              %1016 = vst [vmem:[%s262 + $0x178] sm:$0xff] 0.0
              %1017 = vst [vmem:[%s262 + $0x180] sm:$0xff] 0.0
              %1018 = vst [vmem:[%s262 + $0x188] sm:$0xff] 0.0
              %1019 = vst [vmem:[%s262 + $0x190] sm:$0xff] 0.0
              %1020 = vst [vmem:[%s262 + $0x198] sm:$0xff] 0.0
              %1021 = vst [vmem:[%s262 + $0x1a0] sm:$0xff] 0.0
              %1022 = vst [vmem:[%s262 + $0x1a8] sm:$0xff] 0.0
              %1023 = vst [vmem:[%s262 + $0x1b0] sm:$0xff] 0.0
              %1024 = vst [vmem:[%s262 + $0x1b8] sm:$0xff] 0.0
              %1025 = vst [vmem:[%s262 + $0x1c0] sm:$0xff] 0.0
              %1026 = vst [vmem:[%s262 + $0x1c8] sm:$0xff] 0.0
              %1027 = vst [vmem:[%s262 + $0x1d0] sm:$0xff] 0.0
              %1028 = vst [vmem:[%s262 + $0x1d8] sm:$0xff] 0.0
              %1029 = vst [vmem:[%s262 + $0x1e0] sm:$0xff] 0.0
              %1030 = vst [vmem:[%s262 + $0x1e8] sm:$0xff] 0.0
              %1031 = vst [vmem:[%s262 + $0x1f0] sm:$0xff] 0.0
              %1032 = vst [vmem:[%s262 + $0x1f8] sm:$0xff] 0.0
            $region52: #{tpu_custom_call.1} parent=47 // pred_fallthru
              _
            %v1033 = vlaneseq
            %v1034 = vshrl.u32 %v1033, 7
            %v1035 = vadd.s32 %v1034, 8
            %v1036 = vadd.s32 %v1034, 16
            %v1037 = vadd.s32 %v1034, 24
            %v1038 = vadd.s32 %v1034, 32
            %v1039 = vadd.s32 %v1034, 40
            %v1040 = vadd.s32 %v1034, 48
            %v1041 = vadd.s32 %v1034, 56
            %v1042 = vadd.s32 %v1034, 64
            %v1043 = vadd.s32 %v1034, 72
            %v1044 = vadd.s32 %v1034, 80
            %v1045 = vadd.s32 %v1034, 88
            %v1046 = vadd.s32 %v1034, 96
            %v1047 = vadd.s32 %v1034, 104
            %v1048 = vadd.s32 %v1034, 112
            %v1049 = vadd.s32 %v1034, 120
            %v1050 = vadd.s32 %v1034, 128
            %v1051 = vadd.s32 %v1034, 136
            %v1052 = vadd.s32 %v1034, 144
            %v1053 = vadd.s32 %v1034, 152
            %v1054 = vadd.s32 %v1034, 160
            %v1055 = vadd.s32 %v1034, 168
            %v1056 = vadd.s32 %v1034, 176
            %v1057 = vadd.s32 %v1034, 184
            %v1058 = vadd.s32 %v1034, 192
            %v1059 = vadd.s32 %v1034, 200
            %v1060 = vadd.s32 %v1034, 208
            %v1061 = vadd.s32 %v1034, 216
            %v1062 = vadd.s32 %v1034, 224
            %v1063 = vadd.s32 %v1034, 232
            %v1064 = vadd.s32 %v1034, 240
            %v1065 = vadd.s32 %v1034, 248
            %v1066 = vadd.s32 %v1034, 256
            %v1067 = vadd.s32 %v1034, 264
            %v1068 = vadd.s32 %v1034, 272
            %v1069 = vadd.s32 %v1034, 280
            %v1070 = vadd.s32 %v1034, 288
            %v1071 = vadd.s32 %v1034, 296
            %v1072 = vadd.s32 %v1034, 304
            %v1073 = vadd.s32 %v1034, 312
            %v1074 = vadd.s32 %v1034, 320
            %v1075 = vadd.s32 %v1034, 328
            %v1076 = vadd.s32 %v1034, 336
            %v1077 = vadd.s32 %v1034, 344
            %v1078 = vadd.s32 %v1034, 352
            %v1079 = vadd.s32 %v1034, 360
            %v1080 = vadd.s32 %v1034, 368
            %v1081 = vadd.s32 %v1034, 376
            %v1082 = vadd.s32 %v1034, 384
            %v1083 = vadd.s32 %v1034, 392
            %v1084 = vadd.s32 %v1034, 400
            %v1085 = vadd.s32 %v1034, 408
            %v1086 = vadd.s32 %v1034, 416
            %v1087 = vadd.s32 %v1034, 424
            %v1088 = vadd.s32 %v1034, 432
            %v1089 = vadd.s32 %v1034, 440
            %v1090 = vadd.s32 %v1034, 448
            %v1091 = vadd.s32 %v1034, 456
            %v1092 = vadd.s32 %v1034, 464
            %v1093 = vadd.s32 %v1034, 472
            %v1094 = vadd.s32 %v1034, 480
            %v1095 = vadd.s32 %v1034, 488
            %v1096 = vadd.s32 %v1034, 496
            %v1097 = vadd.s32 %v1034, 504
            %vm1098 = vcmp.ge.s32.totalorder %v1034, 256
            %vm1099 = vcmp.ge.s32.totalorder %v1035, 256
            %vm1100 = vcmp.ge.s32.totalorder %v1036, 256
            %vm1101 = vcmp.ge.s32.totalorder %v1037, 256
            %vm1102 = vcmp.ge.s32.totalorder %v1038, 256
            %vm1103 = vcmp.ge.s32.totalorder %v1039, 256
            %vm1104 = vcmp.ge.s32.totalorder %v1040, 256
            %vm1105 = vcmp.ge.s32.totalorder %v1041, 256
            %vm1106 = vcmp.ge.s32.totalorder %v1042, 256
            %vm1107 = vcmp.ge.s32.totalorder %v1043, 256
            %vm1108 = vcmp.ge.s32.totalorder %v1044, 256
            %vm1109 = vcmp.ge.s32.totalorder %v1045, 256
            %vm1110 = vcmp.ge.s32.totalorder %v1046, 256
            %vm1111 = vcmp.ge.s32.totalorder %v1047, 256
            %vm1112 = vcmp.ge.s32.totalorder %v1048, 256
            %vm1113 = vcmp.ge.s32.totalorder %v1049, 256
            %vm1114 = vcmp.ge.s32.totalorder %v1050, 256
            %vm1115 = vcmp.ge.s32.totalorder %v1051, 256
            %vm1116 = vcmp.ge.s32.totalorder %v1052, 256
            %vm1117 = vcmp.ge.s32.totalorder %v1053, 256
            %vm1118 = vcmp.ge.s32.totalorder %v1054, 256
            %vm1119 = vcmp.ge.s32.totalorder %v1055, 256
            %vm1120 = vcmp.ge.s32.totalorder %v1056, 256
            %vm1121 = vcmp.ge.s32.totalorder %v1057, 256
            %vm1122 = vcmp.ge.s32.totalorder %v1058, 256
            %vm1123 = vcmp.ge.s32.totalorder %v1059, 256
            %vm1124 = vcmp.ge.s32.totalorder %v1060, 256
            %vm1125 = vcmp.ge.s32.totalorder %v1061, 256
            %vm1126 = vcmp.ge.s32.totalorder %v1062, 256
            %vm1127 = vcmp.ge.s32.totalorder %v1063, 256
            %vm1128 = vcmp.ge.s32.totalorder %v1064, 256
            %vm1129 = vcmp.ge.s32.totalorder %v1065, 256
            %vm1130 = vcmp.ge.s32.totalorder %v1066, 256
            %vm1131 = vcmp.ge.s32.totalorder %v1067, 256
            %vm1132 = vcmp.ge.s32.totalorder %v1068, 256
            %vm1133 = vcmp.ge.s32.totalorder %v1069, 256
            %vm1134 = vcmp.ge.s32.totalorder %v1070, 256
            %vm1135 = vcmp.ge.s32.totalorder %v1071, 256
            %vm1136 = vcmp.ge.s32.totalorder %v1072, 256
            %vm1137 = vcmp.ge.s32.totalorder %v1073, 256
            %vm1138 = vcmp.ge.s32.totalorder %v1074, 256
            %vm1139 = vcmp.ge.s32.totalorder %v1075, 256
            %vm1140 = vcmp.ge.s32.totalorder %v1076, 256
            %vm1141 = vcmp.ge.s32.totalorder %v1077, 256
            %vm1142 = vcmp.ge.s32.totalorder %v1078, 256
            %vm1143 = vcmp.ge.s32.totalorder %v1079, 256
            %vm1144 = vcmp.ge.s32.totalorder %v1080, 256
            %vm1145 = vcmp.ge.s32.totalorder %v1081, 256
            %vm1146 = vcmp.ge.s32.totalorder %v1082, 256
            %vm1147 = vcmp.ge.s32.totalorder %v1083, 256
            %vm1148 = vcmp.ge.s32.totalorder %v1084, 256
            %vm1149 = vcmp.ge.s32.totalorder %v1085, 256
            %vm1150 = vcmp.ge.s32.totalorder %v1086, 256
            %vm1151 = vcmp.ge.s32.totalorder %v1087, 256
            %vm1152 = vcmp.ge.s32.totalorder %v1088, 256
            %vm1153 = vcmp.ge.s32.totalorder %v1089, 256
            %vm1154 = vcmp.ge.s32.totalorder %v1090, 256
            %vm1155 = vcmp.ge.s32.totalorder %v1091, 256
            %vm1156 = vcmp.ge.s32.totalorder %v1092, 256
            %vm1157 = vcmp.ge.s32.totalorder %v1093, 256
            %vm1158 = vcmp.ge.s32.totalorder %v1094, 256
            %vm1159 = vcmp.ge.s32.totalorder %v1095, 256
            %vm1160 = vcmp.ge.s32.totalorder %v1096, 256
            %vm1161 = vcmp.ge.s32.totalorder %v1097, 256
            %v1162 = vsub.s32 %v1034, 256
            %v1163 = vsub.s32 %v1035, 256
            %v1164 = vsub.s32 %v1036, 256
            %v1165 = vsub.s32 %v1037, 256
            %v1166 = vsub.s32 %v1038, 256
            %v1167 = vsub.s32 %v1039, 256
            %v1168 = vsub.s32 %v1040, 256
            %v1169 = vsub.s32 %v1041, 256
            %v1170 = vsub.s32 %v1042, 256
            %v1171 = vsub.s32 %v1043, 256
            %v1172 = vsub.s32 %v1044, 256
            %v1173 = vsub.s32 %v1045, 256
            %v1174 = vsub.s32 %v1046, 256
            %v1175 = vsub.s32 %v1047, 256
            %v1176 = vsub.s32 %v1048, 256
            %v1177 = vsub.s32 %v1049, 256
            %v1178 = vsub.s32 %v1050, 256
            %v1179 = vsub.s32 %v1051, 256
            %v1180 = vsub.s32 %v1052, 256
            %v1181 = vsub.s32 %v1053, 256
            %v1182 = vsub.s32 %v1054, 256
            %v1183 = vsub.s32 %v1055, 256
            %v1184 = vsub.s32 %v1056, 256
            %v1185 = vsub.s32 %v1057, 256
            %v1186 = vsub.s32 %v1058, 256
            %v1187 = vsub.s32 %v1059, 256
            %v1188 = vsub.s32 %v1060, 256
            %v1189 = vsub.s32 %v1061, 256
            %v1190 = vsub.s32 %v1062, 256
            %v1191 = vsub.s32 %v1063, 256
            %v1192 = vsub.s32 %v1064, 256
            %v1193 = vsub.s32 %v1065, 256
            %v1194 = vsub.s32 %v1067, 256
            %v1195 = vsub.s32 %v1068, 256
            %v1196 = vsub.s32 %v1069, 256
            %v1197 = vsub.s32 %v1070, 256
            %v1198 = vsub.s32 %v1071, 256
            %v1199 = vsub.s32 %v1072, 256
            %v1200 = vsub.s32 %v1073, 256
            %v1201 = vsub.s32 %v1074, 256
            %v1202 = vsub.s32 %v1075, 256
            %v1203 = vsub.s32 %v1076, 256
            %v1204 = vsub.s32 %v1077, 256
            %v1205 = vsub.s32 %v1078, 256
            %v1206 = vsub.s32 %v1079, 256
            %v1207 = vsub.s32 %v1080, 256
            %v1208 = vsub.s32 %v1081, 256
            %v1209 = vsub.s32 %v1082, 256
            %v1210 = vsub.s32 %v1083, 256
            %v1211 = vsub.s32 %v1084, 256
            %v1212 = vsub.s32 %v1085, 256
            %v1213 = vsub.s32 %v1086, 256
            %v1214 = vsub.s32 %v1087, 256
            %v1215 = vsub.s32 %v1088, 256
            %v1216 = vsub.s32 %v1089, 256
            %v1217 = vsub.s32 %v1090, 256
            %v1218 = vsub.s32 %v1091, 256
            %v1219 = vsub.s32 %v1092, 256
            %v1220 = vsub.s32 %v1093, 256
            %v1221 = vsub.s32 %v1094, 256
            %v1222 = vsub.s32 %v1095, 256
            %v1223 = vsub.s32 %v1096, 256
            %v1224 = vsub.s32 %v1097, 256
            %v1225 = vsel %vm1098, %v1162, %v1034
            %v1226 = vsel %vm1099, %v1163, %v1035
            %v1227 = vsel %vm1100, %v1164, %v1036
            %v1228 = vsel %vm1101, %v1165, %v1037
            %v1229 = vsel %vm1102, %v1166, %v1038
            %v1230 = vsel %vm1103, %v1167, %v1039
            %v1231 = vsel %vm1104, %v1168, %v1040
            %v1232 = vsel %vm1105, %v1169, %v1041
            %v1233 = vsel %vm1106, %v1170, %v1042
            %v1234 = vsel %vm1107, %v1171, %v1043
            %v1235 = vsel %vm1108, %v1172, %v1044
            %v1236 = vsel %vm1109, %v1173, %v1045
            %v1237 = vsel %vm1110, %v1174, %v1046
            %v1238 = vsel %vm1111, %v1175, %v1047
            %v1239 = vsel %vm1112, %v1176, %v1048
            %v1240 = vsel %vm1113, %v1177, %v1049
            %v1241 = vsel %vm1114, %v1178, %v1050
            %v1242 = vsel %vm1115, %v1179, %v1051
            %v1243 = vsel %vm1116, %v1180, %v1052
            %v1244 = vsel %vm1117, %v1181, %v1053
            %v1245 = vsel %vm1118, %v1182, %v1054
            %v1246 = vsel %vm1119, %v1183, %v1055
            %v1247 = vsel %vm1120, %v1184, %v1056
            %v1248 = vsel %vm1121, %v1185, %v1057
            %v1249 = vsel %vm1122, %v1186, %v1058
            %v1250 = vsel %vm1123, %v1187, %v1059
            %v1251 = vsel %vm1124, %v1188, %v1060
            %v1252 = vsel %vm1125, %v1189, %v1061
            %v1253 = vsel %vm1126, %v1190, %v1062
            %v1254 = vsel %vm1127, %v1191, %v1063
            %v1255 = vsel %vm1128, %v1192, %v1064
            %v1256 = vsel %vm1129, %v1193, %v1065
            %v1257 = vsel %vm1130, %v1034, %v1066
            %v1258 = vsel %vm1131, %v1194, %v1067
            %v1259 = vsel %vm1132, %v1195, %v1068
            %v1260 = vsel %vm1133, %v1196, %v1069
            %v1261 = vsel %vm1134, %v1197, %v1070
            %v1262 = vsel %vm1135, %v1198, %v1071
            %v1263 = vsel %vm1136, %v1199, %v1072
            %v1264 = vsel %vm1137, %v1200, %v1073
            %v1265 = vsel %vm1138, %v1201, %v1074
            %v1266 = vsel %vm1139, %v1202, %v1075
            %v1267 = vsel %vm1140, %v1203, %v1076
            %v1268 = vsel %vm1141, %v1204, %v1077
            %v1269 = vsel %vm1142, %v1205, %v1078
            %v1270 = vsel %vm1143, %v1206, %v1079
            %v1271 = vsel %vm1144, %v1207, %v1080
            %v1272 = vsel %vm1145, %v1208, %v1081
            %v1273 = vsel %vm1146, %v1209, %v1082
            %v1274 = vsel %vm1147, %v1210, %v1083
            %v1275 = vsel %vm1148, %v1211, %v1084
            %v1276 = vsel %vm1149, %v1212, %v1085
            %v1277 = vsel %vm1150, %v1213, %v1086
            %v1278 = vsel %vm1151, %v1214, %v1087
            %v1279 = vsel %vm1152, %v1215, %v1088
            %v1280 = vsel %vm1153, %v1216, %v1089
            %v1281 = vsel %vm1154, %v1217, %v1090
            %v1282 = vsel %vm1155, %v1218, %v1091
            %v1283 = vsel %vm1156, %v1219, %v1092
            %v1284 = vsel %vm1157, %v1220, %v1093
            %v1285 = vsel %vm1158, %v1221, %v1094
            %v1286 = vsel %vm1159, %v1222, %v1095
            %v1287 = vsel %vm1160, %v1223, %v1096
            %v1288 = vsel %vm1161, %v1224, %v1097
            %v1289 = vstv %s282
            %vm1290 = vcmp.ge.s32.totalorder %v1225, %v1289
            %vm1291 = vcmp.ge.s32.totalorder %v1226, %v1289
            %vm1292 = vcmp.ge.s32.totalorder %v1227, %v1289
            %vm1293 = vcmp.ge.s32.totalorder %v1228, %v1289
            %vm1294 = vcmp.ge.s32.totalorder %v1229, %v1289
            %vm1295 = vcmp.ge.s32.totalorder %v1230, %v1289
            %vm1296 = vcmp.ge.s32.totalorder %v1231, %v1289
            %vm1297 = vcmp.ge.s32.totalorder %v1232, %v1289
            %vm1298 = vcmp.ge.s32.totalorder %v1233, %v1289
            %vm1299 = vcmp.ge.s32.totalorder %v1234, %v1289
            %vm1300 = vcmp.ge.s32.totalorder %v1235, %v1289
            %vm1301 = vcmp.ge.s32.totalorder %v1236, %v1289
            %vm1302 = vcmp.ge.s32.totalorder %v1237, %v1289
            %vm1303 = vcmp.ge.s32.totalorder %v1238, %v1289
            %vm1304 = vcmp.ge.s32.totalorder %v1239, %v1289
            %vm1305 = vcmp.ge.s32.totalorder %v1240, %v1289
            %vm1306 = vcmp.ge.s32.totalorder %v1241, %v1289
            %vm1307 = vcmp.ge.s32.totalorder %v1242, %v1289
            %vm1308 = vcmp.ge.s32.totalorder %v1243, %v1289
            %vm1309 = vcmp.ge.s32.totalorder %v1244, %v1289
            %vm1310 = vcmp.ge.s32.totalorder %v1245, %v1289
            %vm1311 = vcmp.ge.s32.totalorder %v1246, %v1289
            %vm1312 = vcmp.ge.s32.totalorder %v1247, %v1289
            %vm1313 = vcmp.ge.s32.totalorder %v1248, %v1289
            %vm1314 = vcmp.ge.s32.totalorder %v1249, %v1289
            %vm1315 = vcmp.ge.s32.totalorder %v1250, %v1289
            %vm1316 = vcmp.ge.s32.totalorder %v1251, %v1289
            %vm1317 = vcmp.ge.s32.totalorder %v1252, %v1289
            %vm1318 = vcmp.ge.s32.totalorder %v1253, %v1289
            %vm1319 = vcmp.ge.s32.totalorder %v1254, %v1289
            %vm1320 = vcmp.ge.s32.totalorder %v1255, %v1289
            %vm1321 = vcmp.ge.s32.totalorder %v1256, %v1289
            %vm1322 = vcmp.ge.s32.totalorder %v1257, %v1289
            %vm1323 = vcmp.ge.s32.totalorder %v1258, %v1289
            %vm1324 = vcmp.ge.s32.totalorder %v1259, %v1289
            %vm1325 = vcmp.ge.s32.totalorder %v1260, %v1289
            %vm1326 = vcmp.ge.s32.totalorder %v1261, %v1289
            %vm1327 = vcmp.ge.s32.totalorder %v1262, %v1289
            %vm1328 = vcmp.ge.s32.totalorder %v1263, %v1289
            %vm1329 = vcmp.ge.s32.totalorder %v1264, %v1289
            %vm1330 = vcmp.ge.s32.totalorder %v1265, %v1289
            %vm1331 = vcmp.ge.s32.totalorder %v1266, %v1289
            %vm1332 = vcmp.ge.s32.totalorder %v1267, %v1289
            %vm1333 = vcmp.ge.s32.totalorder %v1268, %v1289
            %vm1334 = vcmp.ge.s32.totalorder %v1269, %v1289
            %vm1335 = vcmp.ge.s32.totalorder %v1270, %v1289
            %vm1336 = vcmp.ge.s32.totalorder %v1271, %v1289
            %vm1337 = vcmp.ge.s32.totalorder %v1272, %v1289
            %vm1338 = vcmp.ge.s32.totalorder %v1273, %v1289
            %vm1339 = vcmp.ge.s32.totalorder %v1274, %v1289
            %vm1340 = vcmp.ge.s32.totalorder %v1275, %v1289
            %vm1341 = vcmp.ge.s32.totalorder %v1276, %v1289
            %vm1342 = vcmp.ge.s32.totalorder %v1277, %v1289
            %vm1343 = vcmp.ge.s32.totalorder %v1278, %v1289
            %vm1344 = vcmp.ge.s32.totalorder %v1279, %v1289
            %vm1345 = vcmp.ge.s32.totalorder %v1280, %v1289
            %vm1346 = vcmp.ge.s32.totalorder %v1281, %v1289
            %vm1347 = vcmp.ge.s32.totalorder %v1282, %v1289
            %vm1348 = vcmp.ge.s32.totalorder %v1283, %v1289
            %vm1349 = vcmp.ge.s32.totalorder %v1284, %v1289
            %vm1350 = vcmp.ge.s32.totalorder %v1285, %v1289
            %vm1351 = vcmp.ge.s32.totalorder %v1286, %v1289
            %vm1352 = vcmp.ge.s32.totalorder %v1287, %v1289
            %vm1353 = vcmp.ge.s32.totalorder %v1288, %v1289
            %s1354 = sadd.s32 %s282, %s283
            %v1355 = vstv %s1354
            %vm1356 = vcmp.lt.s32.totalorder %v1225, %v1355
            %vm1357 = vcmp.lt.s32.totalorder %v1226, %v1355
            %vm1358 = vcmp.lt.s32.totalorder %v1227, %v1355
            %vm1359 = vcmp.lt.s32.totalorder %v1228, %v1355
            %vm1360 = vcmp.lt.s32.totalorder %v1229, %v1355
            %vm1361 = vcmp.lt.s32.totalorder %v1230, %v1355
            %vm1362 = vcmp.lt.s32.totalorder %v1231, %v1355
            %vm1363 = vcmp.lt.s32.totalorder %v1232, %v1355
            %vm1364 = vcmp.lt.s32.totalorder %v1233, %v1355
            %vm1365 = vcmp.lt.s32.totalorder %v1234, %v1355
            %vm1366 = vcmp.lt.s32.totalorder %v1235, %v1355
            %vm1367 = vcmp.lt.s32.totalorder %v1236, %v1355
            %vm1368 = vcmp.lt.s32.totalorder %v1237, %v1355
            %vm1369 = vcmp.lt.s32.totalorder %v1238, %v1355
            %vm1370 = vcmp.lt.s32.totalorder %v1239, %v1355
            %vm1371 = vcmp.lt.s32.totalorder %v1240, %v1355
            %vm1372 = vcmp.lt.s32.totalorder %v1241, %v1355
            %vm1373 = vcmp.lt.s32.totalorder %v1242, %v1355
            %vm1374 = vcmp.lt.s32.totalorder %v1243, %v1355
            %vm1375 = vcmp.lt.s32.totalorder %v1244, %v1355
            %vm1376 = vcmp.lt.s32.totalorder %v1245, %v1355
            %vm1377 = vcmp.lt.s32.totalorder %v1246, %v1355
            %vm1378 = vcmp.lt.s32.totalorder %v1247, %v1355
            %vm1379 = vcmp.lt.s32.totalorder %v1248, %v1355
            %vm1380 = vcmp.lt.s32.totalorder %v1249, %v1355
            %vm1381 = vcmp.lt.s32.totalorder %v1250, %v1355
            %vm1382 = vcmp.lt.s32.totalorder %v1251, %v1355
            %vm1383 = vcmp.lt.s32.totalorder %v1252, %v1355
            %vm1384 = vcmp.lt.s32.totalorder %v1253, %v1355
            %vm1385 = vcmp.lt.s32.totalorder %v1254, %v1355
            %vm1386 = vcmp.lt.s32.totalorder %v1255, %v1355
            %vm1387 = vcmp.lt.s32.totalorder %v1256, %v1355
            %vm1388 = vcmp.lt.s32.totalorder %v1257, %v1355
            %vm1389 = vcmp.lt.s32.totalorder %v1258, %v1355
            %vm1390 = vcmp.lt.s32.totalorder %v1259, %v1355
            %vm1391 = vcmp.lt.s32.totalorder %v1260, %v1355
            %vm1392 = vcmp.lt.s32.totalorder %v1261, %v1355
            %vm1393 = vcmp.lt.s32.totalorder %v1262, %v1355
            %vm1394 = vcmp.lt.s32.totalorder %v1263, %v1355
            %vm1395 = vcmp.lt.s32.totalorder %v1264, %v1355
            %vm1396 = vcmp.lt.s32.totalorder %v1265, %v1355
            %vm1397 = vcmp.lt.s32.totalorder %v1266, %v1355
            %vm1398 = vcmp.lt.s32.totalorder %v1267, %v1355
            %vm1399 = vcmp.lt.s32.totalorder %v1268, %v1355
            %vm1400 = vcmp.lt.s32.totalorder %v1269, %v1355
            %vm1401 = vcmp.lt.s32.totalorder %v1270, %v1355
            %vm1402 = vcmp.lt.s32.totalorder %v1271, %v1355
            %vm1403 = vcmp.lt.s32.totalorder %v1272, %v1355
            %vm1404 = vcmp.lt.s32.totalorder %v1273, %v1355
            %vm1405 = vcmp.lt.s32.totalorder %v1274, %v1355
            %vm1406 = vcmp.lt.s32.totalorder %v1275, %v1355
            %vm1407 = vcmp.lt.s32.totalorder %v1276, %v1355
            %vm1408 = vcmp.lt.s32.totalorder %v1277, %v1355
            %vm1409 = vcmp.lt.s32.totalorder %v1278, %v1355
            %vm1410 = vcmp.lt.s32.totalorder %v1279, %v1355
            %vm1411 = vcmp.lt.s32.totalorder %v1280, %v1355
            %vm1412 = vcmp.lt.s32.totalorder %v1281, %v1355
            %vm1413 = vcmp.lt.s32.totalorder %v1282, %v1355
            %vm1414 = vcmp.lt.s32.totalorder %v1283, %v1355
            %vm1415 = vcmp.lt.s32.totalorder %v1284, %v1355
            %vm1416 = vcmp.lt.s32.totalorder %v1285, %v1355
            %vm1417 = vcmp.lt.s32.totalorder %v1286, %v1355
            %vm1418 = vcmp.lt.s32.totalorder %v1287, %v1355
            %vm1419 = vcmp.lt.s32.totalorder %v1288, %v1355
            %vm1420 = vmand %vm1290, %vm1356
            %vm1421 = vmand %vm1291, %vm1357
            %vm1422 = vmand %vm1292, %vm1358
            %vm1423 = vmand %vm1293, %vm1359
            %vm1424 = vmand %vm1294, %vm1360
            %vm1425 = vmand %vm1295, %vm1361
            %vm1426 = vmand %vm1296, %vm1362
            %vm1427 = vmand %vm1297, %vm1363
            %vm1428 = vmand %vm1298, %vm1364
            %vm1429 = vmand %vm1299, %vm1365
            %vm1430 = vmand %vm1300, %vm1366
            %vm1431 = vmand %vm1301, %vm1367
            %vm1432 = vmand %vm1302, %vm1368
            %vm1433 = vmand %vm1303, %vm1369
            %vm1434 = vmand %vm1304, %vm1370
            %vm1435 = vmand %vm1305, %vm1371
            %vm1436 = vmand %vm1306, %vm1372
            %vm1437 = vmand %vm1307, %vm1373
            %vm1438 = vmand %vm1308, %vm1374
            %vm1439 = vmand %vm1309, %vm1375
            %vm1440 = vmand %vm1310, %vm1376
            %vm1441 = vmand %vm1311, %vm1377
            %vm1442 = vmand %vm1312, %vm1378
            %vm1443 = vmand %vm1313, %vm1379
            %vm1444 = vmand %vm1314, %vm1380
            %vm1445 = vmand %vm1315, %vm1381
            %vm1446 = vmand %vm1316, %vm1382
            %vm1447 = vmand %vm1317, %vm1383
            %vm1448 = vmand %vm1318, %vm1384
            %vm1449 = vmand %vm1319, %vm1385
            %vm1450 = vmand %vm1320, %vm1386
            %vm1451 = vmand %vm1321, %vm1387
            %vm1452 = vmand %vm1322, %vm1388
            %vm1453 = vmand %vm1323, %vm1389
            %vm1454 = vmand %vm1324, %vm1390
            %vm1455 = vmand %vm1325, %vm1391
            %vm1456 = vmand %vm1326, %vm1392
            %vm1457 = vmand %vm1327, %vm1393
            %vm1458 = vmand %vm1328, %vm1394
            %vm1459 = vmand %vm1329, %vm1395
            %vm1460 = vmand %vm1330, %vm1396
            %vm1461 = vmand %vm1331, %vm1397
            %vm1462 = vmand %vm1332, %vm1398
            %vm1463 = vmand %vm1333, %vm1399
            %vm1464 = vmand %vm1334, %vm1400
            %vm1465 = vmand %vm1335, %vm1401
            %vm1466 = vmand %vm1336, %vm1402
            %vm1467 = vmand %vm1337, %vm1403
            %vm1468 = vmand %vm1338, %vm1404
            %vm1469 = vmand %vm1339, %vm1405
            %vm1470 = vmand %vm1340, %vm1406
            %vm1471 = vmand %vm1341, %vm1407
            %vm1472 = vmand %vm1342, %vm1408
            %vm1473 = vmand %vm1343, %vm1409
            %vm1474 = vmand %vm1344, %vm1410
            %vm1475 = vmand %vm1345, %vm1411
            %vm1476 = vmand %vm1346, %vm1412
            %vm1477 = vmand %vm1347, %vm1413
            %vm1478 = vmand %vm1348, %vm1414
            %vm1479 = vmand %vm1349, %vm1415
            %vm1480 = vmand %vm1350, %vm1416
            %vm1481 = vmand %vm1351, %vm1417
            %vm1482 = vmand %vm1352, %vm1418
            %vm1483 = vmand %vm1353, %vm1419
            %v1484 = vld [vmem:[%s262] sm:$0xff]
            %v1485 = vld [vmem:[%s262 + $0x8] sm:$0xff]
            %v1486 = vld [vmem:[%s262 + $0x10] sm:$0xff]
            %v1487 = vld [vmem:[%s262 + $0x18] sm:$0xff]
            %v1488 = vld [vmem:[%s262 + $0x20] sm:$0xff]
            %v1489 = vld [vmem:[%s262 + $0x28] sm:$0xff]
            %v1490 = vld [vmem:[%s262 + $0x30] sm:$0xff]
            %v1491 = vld [vmem:[%s262 + $0x38] sm:$0xff]
            %v1492 = vld [vmem:[%s262 + $0x40] sm:$0xff]
            %v1493 = vld [vmem:[%s262 + $0x48] sm:$0xff]
            %v1494 = vld [vmem:[%s262 + $0x50] sm:$0xff]
            %v1495 = vld [vmem:[%s262 + $0x58] sm:$0xff]
            %v1496 = vld [vmem:[%s262 + $0x60] sm:$0xff]
            %v1497 = vld [vmem:[%s262 + $0x68] sm:$0xff]
            %v1498 = vld [vmem:[%s262 + $0x70] sm:$0xff]
            %v1499 = vld [vmem:[%s262 + $0x78] sm:$0xff]
            %v1500 = vld [vmem:[%s262 + $0x80] sm:$0xff]
            %v1501 = vld [vmem:[%s262 + $0x88] sm:$0xff]
            %v1502 = vld [vmem:[%s262 + $0x90] sm:$0xff]
            %v1503 = vld [vmem:[%s262 + $0x98] sm:$0xff]
            %v1504 = vld [vmem:[%s262 + $0xa0] sm:$0xff]
            %v1505 = vld [vmem:[%s262 + $0xa8] sm:$0xff]
            %v1506 = vld [vmem:[%s262 + $0xb0] sm:$0xff]
            %v1507 = vld [vmem:[%s262 + $0xb8] sm:$0xff]
            %v1508 = vld [vmem:[%s262 + $0xc0] sm:$0xff]
            %v1509 = vld [vmem:[%s262 + $0xc8] sm:$0xff]
            %v1510 = vld [vmem:[%s262 + $0xd0] sm:$0xff]
            %v1511 = vld [vmem:[%s262 + $0xd8] sm:$0xff]
            %v1512 = vld [vmem:[%s262 + $0xe0] sm:$0xff]
            %v1513 = vld [vmem:[%s262 + $0xe8] sm:$0xff]
            %v1514 = vld [vmem:[%s262 + $0xf0] sm:$0xff]
            %v1515 = vld [vmem:[%s262 + $0xf8] sm:$0xff]
            %v1516 = vld [vmem:[%s262 + $0x100] sm:$0xff]
            %v1517 = vld [vmem:[%s262 + $0x108] sm:$0xff]
            %v1518 = vld [vmem:[%s262 + $0x110] sm:$0xff]
            %v1519 = vld [vmem:[%s262 + $0x118] sm:$0xff]
            %v1520 = vld [vmem:[%s262 + $0x120] sm:$0xff]
            %v1521 = vld [vmem:[%s262 + $0x128] sm:$0xff]
            %v1522 = vld [vmem:[%s262 + $0x130] sm:$0xff]
            %v1523 = vld [vmem:[%s262 + $0x138] sm:$0xff]
            %v1524 = vld [vmem:[%s262 + $0x140] sm:$0xff]
            %v1525 = vld [vmem:[%s262 + $0x148] sm:$0xff]
            %v1526 = vld [vmem:[%s262 + $0x150] sm:$0xff]
            %v1527 = vld [vmem:[%s262 + $0x158] sm:$0xff]
            %v1528 = vld [vmem:[%s262 + $0x160] sm:$0xff]
            %v1529 = vld [vmem:[%s262 + $0x168] sm:$0xff]
            %v1530 = vld [vmem:[%s262 + $0x170] sm:$0xff]
            %v1531 = vld [vmem:[%s262 + $0x178] sm:$0xff]
            %v1532 = vld [vmem:[%s262 + $0x180] sm:$0xff]
            %v1533 = vld [vmem:[%s262 + $0x188] sm:$0xff]
            %v1534 = vld [vmem:[%s262 + $0x190] sm:$0xff]
            %v1535 = vld [vmem:[%s262 + $0x198] sm:$0xff]
            %v1536 = vld [vmem:[%s262 + $0x1a0] sm:$0xff]
            %v1537 = vld [vmem:[%s262 + $0x1a8] sm:$0xff]
            %v1538 = vld [vmem:[%s262 + $0x1b0] sm:$0xff]
            %v1539 = vld [vmem:[%s262 + $0x1b8] sm:$0xff]
            %v1540 = vld [vmem:[%s262 + $0x1c0] sm:$0xff]
            %v1541 = vld [vmem:[%s262 + $0x1c8] sm:$0xff]
            %v1542 = vld [vmem:[%s262 + $0x1d0] sm:$0xff]
            %v1543 = vld [vmem:[%s262 + $0x1d8] sm:$0xff]
            %v1544 = vld [vmem:[%s262 + $0x1e0] sm:$0xff]
            %v1545 = vld [vmem:[%s262 + $0x1e8] sm:$0xff]
            %v1546 = vld [vmem:[%s262 + $0x1f0] sm:$0xff]
            %v1547 = vld [vmem:[%s262 + $0x1f8] sm:$0xff]
            %v1548 = vsel %vm1420, 1, 0
            %v1549 = vsel %vm1421, 1, 0
            %v1550 = vsel %vm1422, 1, 0
            %v1551 = vsel %vm1423, 1, 0
            %v1552 = vsel %vm1424, 1, 0
            %v1553 = vsel %vm1425, 1, 0
            %v1554 = vsel %vm1426, 1, 0
            %v1555 = vsel %vm1427, 1, 0
            %v1556 = vsel %vm1428, 1, 0
            %v1557 = vsel %vm1429, 1, 0
            %v1558 = vsel %vm1430, 1, 0
            %v1559 = vsel %vm1431, 1, 0
            %v1560 = vsel %vm1432, 1, 0
            %v1561 = vsel %vm1433, 1, 0
            %v1562 = vsel %vm1434, 1, 0
            %v1563 = vsel %vm1435, 1, 0
            %v1564 = vsel %vm1436, 1, 0
            %v1565 = vsel %vm1437, 1, 0
            %v1566 = vsel %vm1438, 1, 0
            %v1567 = vsel %vm1439, 1, 0
            %v1568 = vsel %vm1440, 1, 0
            %v1569 = vsel %vm1441, 1, 0
            %v1570 = vsel %vm1442, 1, 0
            %v1571 = vsel %vm1443, 1, 0
            %v1572 = vsel %vm1444, 1, 0
            %v1573 = vsel %vm1445, 1, 0
            %v1574 = vsel %vm1446, 1, 0
            %v1575 = vsel %vm1447, 1, 0
            %v1576 = vsel %vm1448, 1, 0
            %v1577 = vsel %vm1449, 1, 0
            %v1578 = vsel %vm1450, 1, 0
            %v1579 = vsel %vm1451, 1, 0
            %v1580 = vsel %vm1452, 1, 0
            %v1581 = vsel %vm1453, 1, 0
            %v1582 = vsel %vm1454, 1, 0
            %v1583 = vsel %vm1455, 1, 0
            %v1584 = vsel %vm1456, 1, 0
            %v1585 = vsel %vm1457, 1, 0
            %v1586 = vsel %vm1458, 1, 0
            %v1587 = vsel %vm1459, 1, 0
            %v1588 = vsel %vm1460, 1, 0
            %v1589 = vsel %vm1461, 1, 0
            %v1590 = vsel %vm1462, 1, 0
            %v1591 = vsel %vm1463, 1, 0
            %v1592 = vsel %vm1464, 1, 0
            %v1593 = vsel %vm1465, 1, 0
            %v1594 = vsel %vm1466, 1, 0
            %v1595 = vsel %vm1467, 1, 0
            %v1596 = vsel %vm1468, 1, 0
            %v1597 = vsel %vm1469, 1, 0
            %v1598 = vsel %vm1470, 1, 0
            %v1599 = vsel %vm1471, 1, 0
            %v1600 = vsel %vm1472, 1, 0
            %v1601 = vsel %vm1473, 1, 0
            %v1602 = vsel %vm1474, 1, 0
            %v1603 = vsel %vm1475, 1, 0
            %v1604 = vsel %vm1476, 1, 0
            %v1605 = vsel %vm1477, 1, 0
            %v1606 = vsel %vm1478, 1, 0
            %v1607 = vsel %vm1479, 1, 0
            %v1608 = vsel %vm1480, 1, 0
            %v1609 = vsel %vm1481, 1, 0
            %v1610 = vsel %vm1482, 1, 0
            %v1611 = vsel %vm1483, 1, 0
            %vm1612 = vcmp.eq.s32.totalorder %v1548, 1
            %vm1613 = vcmp.eq.s32.totalorder %v1549, 1
            %vm1614 = vcmp.eq.s32.totalorder %v1550, 1
            %vm1615 = vcmp.eq.s32.totalorder %v1551, 1
            %vm1616 = vcmp.eq.s32.totalorder %v1552, 1
            %vm1617 = vcmp.eq.s32.totalorder %v1553, 1
            %vm1618 = vcmp.eq.s32.totalorder %v1554, 1
            %vm1619 = vcmp.eq.s32.totalorder %v1555, 1
            %vm1620 = vcmp.eq.s32.totalorder %v1556, 1
            %vm1621 = vcmp.eq.s32.totalorder %v1557, 1
            %vm1622 = vcmp.eq.s32.totalorder %v1558, 1
            %vm1623 = vcmp.eq.s32.totalorder %v1559, 1
            %vm1624 = vcmp.eq.s32.totalorder %v1560, 1
            %vm1625 = vcmp.eq.s32.totalorder %v1561, 1
            %vm1626 = vcmp.eq.s32.totalorder %v1562, 1
            %vm1627 = vcmp.eq.s32.totalorder %v1563, 1
            %vm1628 = vcmp.eq.s32.totalorder %v1564, 1
            %vm1629 = vcmp.eq.s32.totalorder %v1565, 1
            %vm1630 = vcmp.eq.s32.totalorder %v1566, 1
            %vm1631 = vcmp.eq.s32.totalorder %v1567, 1
            %vm1632 = vcmp.eq.s32.totalorder %v1568, 1
            %vm1633 = vcmp.eq.s32.totalorder %v1569, 1
            %vm1634 = vcmp.eq.s32.totalorder %v1570, 1
            %vm1635 = vcmp.eq.s32.totalorder %v1571, 1
            %vm1636 = vcmp.eq.s32.totalorder %v1572, 1
            %vm1637 = vcmp.eq.s32.totalorder %v1573, 1
            %vm1638 = vcmp.eq.s32.totalorder %v1574, 1
            %vm1639 = vcmp.eq.s32.totalorder %v1575, 1
            %vm1640 = vcmp.eq.s32.totalorder %v1576, 1
            %vm1641 = vcmp.eq.s32.totalorder %v1577, 1
            %vm1642 = vcmp.eq.s32.totalorder %v1578, 1
            %vm1643 = vcmp.eq.s32.totalorder %v1579, 1
            %vm1644 = vcmp.eq.s32.totalorder %v1580, 1
            %vm1645 = vcmp.eq.s32.totalorder %v1581, 1
            %vm1646 = vcmp.eq.s32.totalorder %v1582, 1
            %vm1647 = vcmp.eq.s32.totalorder %v1583, 1
            %vm1648 = vcmp.eq.s32.totalorder %v1584, 1
            %vm1649 = vcmp.eq.s32.totalorder %v1585, 1
            %vm1650 = vcmp.eq.s32.totalorder %v1586, 1
            %vm1651 = vcmp.eq.s32.totalorder %v1587, 1
            %vm1652 = vcmp.eq.s32.totalorder %v1588, 1
            %vm1653 = vcmp.eq.s32.totalorder %v1589, 1
            %vm1654 = vcmp.eq.s32.totalorder %v1590, 1
            %vm1655 = vcmp.eq.s32.totalorder %v1591, 1
            %vm1656 = vcmp.eq.s32.totalorder %v1592, 1
            %vm1657 = vcmp.eq.s32.totalorder %v1593, 1
            %vm1658 = vcmp.eq.s32.totalorder %v1594, 1
            %vm1659 = vcmp.eq.s32.totalorder %v1595, 1
            %vm1660 = vcmp.eq.s32.totalorder %v1596, 1
            %vm1661 = vcmp.eq.s32.totalorder %v1597, 1
            %vm1662 = vcmp.eq.s32.totalorder %v1598, 1
            %vm1663 = vcmp.eq.s32.totalorder %v1599, 1
            %vm1664 = vcmp.eq.s32.totalorder %v1600, 1
            %vm1665 = vcmp.eq.s32.totalorder %v1601, 1
            %vm1666 = vcmp.eq.s32.totalorder %v1602, 1
            %vm1667 = vcmp.eq.s32.totalorder %v1603, 1
            %vm1668 = vcmp.eq.s32.totalorder %v1604, 1
            %vm1669 = vcmp.eq.s32.totalorder %v1605, 1
            %vm1670 = vcmp.eq.s32.totalorder %v1606, 1
            %vm1671 = vcmp.eq.s32.totalorder %v1607, 1
            %vm1672 = vcmp.eq.s32.totalorder %v1608, 1
            %vm1673 = vcmp.eq.s32.totalorder %v1609, 1
            %vm1674 = vcmp.eq.s32.totalorder %v1610, 1
            %vm1675 = vcmp.eq.s32.totalorder %v1611, 1
            %v1676 = vsel %vm1612, %v641, 0.0
            %v1677 = vsel %vm1613, %v644, 0.0
            %v1678 = vsel %vm1614, %v649, 0.0
            %v1679 = vsel %vm1615, %v652, 0.0
            %v1680 = vsel %vm1616, %v657, 0.0
            %v1681 = vsel %vm1617, %v660, 0.0
            %v1682 = vsel %vm1618, %v665, 0.0
            %v1683 = vsel %vm1619, %v668, 0.0
            %v1684 = vsel %vm1620, %v673, 0.0
            %v1685 = vsel %vm1621, %v676, 0.0
            %v1686 = vsel %vm1622, %v681, 0.0
            %v1687 = vsel %vm1623, %v684, 0.0
            %v1688 = vsel %vm1624, %v689, 0.0
            %v1689 = vsel %vm1625, %v692, 0.0
            %v1690 = vsel %vm1626, %v697, 0.0
            %v1691 = vsel %vm1627, %v700, 0.0
            %v1692 = vsel %vm1628, %v705, 0.0
            %v1693 = vsel %vm1629, %v708, 0.0
            %v1694 = vsel %vm1630, %v713, 0.0
            %v1695 = vsel %vm1631, %v716, 0.0
            %v1696 = vsel %vm1632, %v721, 0.0
            %v1697 = vsel %vm1633, %v724, 0.0
            %v1698 = vsel %vm1634, %v729, 0.0
            %v1699 = vsel %vm1635, %v732, 0.0
            %v1700 = vsel %vm1636, %v737, 0.0
            %v1701 = vsel %vm1637, %v740, 0.0
            %v1702 = vsel %vm1638, %v745, 0.0
            %v1703 = vsel %vm1639, %v748, 0.0
            %v1704 = vsel %vm1640, %v753, 0.0
            %v1705 = vsel %vm1641, %v756, 0.0
            %v1706 = vsel %vm1642, %v761, 0.0
            %v1707 = vsel %vm1643, %v764, 0.0
            %v1708 = vsel %vm1644, %v769, 0.0
            %v1709 = vsel %vm1645, %v772, 0.0
            %v1710 = vsel %vm1646, %v777, 0.0
            %v1711 = vsel %vm1647, %v780, 0.0
            %v1712 = vsel %vm1648, %v785, 0.0
            %v1713 = vsel %vm1649, %v788, 0.0
            %v1714 = vsel %vm1650, %v793, 0.0
            %v1715 = vsel %vm1651, %v796, 0.0
            %v1716 = vsel %vm1652, %v801, 0.0
            %v1717 = vsel %vm1653, %v804, 0.0
            %v1718 = vsel %vm1654, %v809, 0.0
            %v1719 = vsel %vm1655, %v812, 0.0
            %v1720 = vsel %vm1656, %v817, 0.0
            %v1721 = vsel %vm1657, %v820, 0.0
            %v1722 = vsel %vm1658, %v825, 0.0
            %v1723 = vsel %vm1659, %v828, 0.0
            %v1724 = vsel %vm1660, %v833, 0.0
            %v1725 = vsel %vm1661, %v836, 0.0
            %v1726 = vsel %vm1662, %v841, 0.0
            %v1727 = vsel %vm1663, %v844, 0.0
            %v1728 = vsel %vm1664, %v849, 0.0
            %v1729 = vsel %vm1665, %v852, 0.0
            %v1730 = vsel %vm1666, %v857, 0.0
            %v1731 = vsel %vm1667, %v860, 0.0
            %v1732 = vsel %vm1668, %v865, 0.0
            %v1733 = vsel %vm1669, %v868, 0.0
            %v1734 = vsel %vm1670, %v873, 0.0
            %v1735 = vsel %vm1671, %v876, 0.0
            %v1736 = vsel %vm1672, %v881, 0.0
            %v1737 = vsel %vm1673, %v884, 0.0
            %v1738 = vsel %vm1674, %v889, 0.0
            %v1739 = vsel %vm1675, %v892, 0.0
            %v1740 = vadd.f32 %v1484, %v1676
            %v1741 = vadd.f32 %v1485, %v1677
            %v1742 = vadd.f32 %v1486, %v1678
            %v1743 = vadd.f32 %v1487, %v1679
            %v1744 = vadd.f32 %v1488, %v1680
            %v1745 = vadd.f32 %v1489, %v1681
            %v1746 = vadd.f32 %v1490, %v1682
            %v1747 = vadd.f32 %v1491, %v1683
            %v1748 = vadd.f32 %v1492, %v1684
            %v1749 = vadd.f32 %v1493, %v1685
            %v1750 = vadd.f32 %v1494, %v1686
            %v1751 = vadd.f32 %v1495, %v1687
            %v1752 = vadd.f32 %v1496, %v1688
            %v1753 = vadd.f32 %v1497, %v1689
            %v1754 = vadd.f32 %v1498, %v1690
            %v1755 = vadd.f32 %v1499, %v1691
            %v1756 = vadd.f32 %v1500, %v1692
            %v1757 = vadd.f32 %v1501, %v1693
            %v1758 = vadd.f32 %v1502, %v1694
            %v1759 = vadd.f32 %v1503, %v1695
            %v1760 = vadd.f32 %v1504, %v1696
            %v1761 = vadd.f32 %v1505, %v1697
            %v1762 = vadd.f32 %v1506, %v1698
            %v1763 = vadd.f32 %v1507, %v1699
            %v1764 = vadd.f32 %v1508, %v1700
            %v1765 = vadd.f32 %v1509, %v1701
            %v1766 = vadd.f32 %v1510, %v1702
            %v1767 = vadd.f32 %v1511, %v1703
            %v1768 = vadd.f32 %v1512, %v1704
            %v1769 = vadd.f32 %v1513, %v1705
            %v1770 = vadd.f32 %v1514, %v1706
            %v1771 = vadd.f32 %v1515, %v1707
            %v1772 = vadd.f32 %v1516, %v1708
            %v1773 = vadd.f32 %v1517, %v1709
            %v1774 = vadd.f32 %v1518, %v1710
            %v1775 = vadd.f32 %v1519, %v1711
            %v1776 = vadd.f32 %v1520, %v1712
            %v1777 = vadd.f32 %v1521, %v1713
            %v1778 = vadd.f32 %v1522, %v1714
            %v1779 = vadd.f32 %v1523, %v1715
            %v1780 = vadd.f32 %v1524, %v1716
            %v1781 = vadd.f32 %v1525, %v1717
            %v1782 = vadd.f32 %v1526, %v1718
            %v1783 = vadd.f32 %v1527, %v1719
            %v1784 = vadd.f32 %v1528, %v1720
            %v1785 = vadd.f32 %v1529, %v1721
            %v1786 = vadd.f32 %v1530, %v1722
            %v1787 = vadd.f32 %v1531, %v1723
            %v1788 = vadd.f32 %v1532, %v1724
            %v1789 = vadd.f32 %v1533, %v1725
            %v1790 = vadd.f32 %v1534, %v1726
            %v1791 = vadd.f32 %v1535, %v1727
            %v1792 = vadd.f32 %v1536, %v1728
            %v1793 = vadd.f32 %v1537, %v1729
            %v1794 = vadd.f32 %v1538, %v1730
            %v1795 = vadd.f32 %v1539, %v1731
            %v1796 = vadd.f32 %v1540, %v1732
            %v1797 = vadd.f32 %v1541, %v1733
            %v1798 = vadd.f32 %v1542, %v1734
            %v1799 = vadd.f32 %v1543, %v1735
            %v1800 = vadd.f32 %v1544, %v1736
            %v1801 = vadd.f32 %v1545, %v1737
            %v1802 = vadd.f32 %v1546, %v1738
            %v1803 = vadd.f32 %v1547, %v1739
            %1804 = vst [vmem:[%s262] sm:$0xff] %v1740
            %1805 = vst [vmem:[%s262 + $0x8] sm:$0xff] %v1741
            %1806 = vst [vmem:[%s262 + $0x10] sm:$0xff] %v1742
            %1807 = vst [vmem:[%s262 + $0x18] sm:$0xff] %v1743
            %1808 = vst [vmem:[%s262 + $0x20] sm:$0xff] %v1744
            %1809 = vst [vmem:[%s262 + $0x28] sm:$0xff] %v1745
            %1810 = vst [vmem:[%s262 + $0x30] sm:$0xff] %v1746
            %1811 = vst [vmem:[%s262 + $0x38] sm:$0xff] %v1747
            %1812 = vst [vmem:[%s262 + $0x40] sm:$0xff] %v1748
            %1813 = vst [vmem:[%s262 + $0x48] sm:$0xff] %v1749
            %1814 = vst [vmem:[%s262 + $0x50] sm:$0xff] %v1750
            %1815 = vst [vmem:[%s262 + $0x58] sm:$0xff] %v1751
            %1816 = vst [vmem:[%s262 + $0x60] sm:$0xff] %v1752
            %1817 = vst [vmem:[%s262 + $0x68] sm:$0xff] %v1753
            %1818 = vst [vmem:[%s262 + $0x70] sm:$0xff] %v1754
            %1819 = vst [vmem:[%s262 + $0x78] sm:$0xff] %v1755
            %1820 = vst [vmem:[%s262 + $0x80] sm:$0xff] %v1756
            %1821 = vst [vmem:[%s262 + $0x88] sm:$0xff] %v1757
            %1822 = vst [vmem:[%s262 + $0x90] sm:$0xff] %v1758
            %1823 = vst [vmem:[%s262 + $0x98] sm:$0xff] %v1759
            %1824 = vst [vmem:[%s262 + $0xa0] sm:$0xff] %v1760
            %1825 = vst [vmem:[%s262 + $0xa8] sm:$0xff] %v1761
            %1826 = vst [vmem:[%s262 + $0xb0] sm:$0xff] %v1762
            %1827 = vst [vmem:[%s262 + $0xb8] sm:$0xff] %v1763
            %1828 = vst [vmem:[%s262 + $0xc0] sm:$0xff] %v1764
            %1829 = vst [vmem:[%s262 + $0xc8] sm:$0xff] %v1765
            %1830 = vst [vmem:[%s262 + $0xd0] sm:$0xff] %v1766
            %1831 = vst [vmem:[%s262 + $0xd8] sm:$0xff] %v1767
            %1832 = vst [vmem:[%s262 + $0xe0] sm:$0xff] %v1768
            %1833 = vst [vmem:[%s262 + $0xe8] sm:$0xff] %v1769
            %1834 = vst [vmem:[%s262 + $0xf0] sm:$0xff] %v1770
            %1835 = vst [vmem:[%s262 + $0xf8] sm:$0xff] %v1771
            %1836 = vst [vmem:[%s262 + $0x100] sm:$0xff] %v1772
            %1837 = vst [vmem:[%s262 + $0x108] sm:$0xff] %v1773
            %1838 = vst [vmem:[%s262 + $0x110] sm:$0xff] %v1774
            %1839 = vst [vmem:[%s262 + $0x118] sm:$0xff] %v1775
            %1840 = vst [vmem:[%s262 + $0x120] sm:$0xff] %v1776
            %1841 = vst [vmem:[%s262 + $0x128] sm:$0xff] %v1777
            %1842 = vst [vmem:[%s262 + $0x130] sm:$0xff] %v1778
            %1843 = vst [vmem:[%s262 + $0x138] sm:$0xff] %v1779
            %1844 = vst [vmem:[%s262 + $0x140] sm:$0xff] %v1780
            %1845 = vst [vmem:[%s262 + $0x148] sm:$0xff] %v1781
            %1846 = vst [vmem:[%s262 + $0x150] sm:$0xff] %v1782
            %1847 = vst [vmem:[%s262 + $0x158] sm:$0xff] %v1783
            %1848 = vst [vmem:[%s262 + $0x160] sm:$0xff] %v1784
            %1849 = vst [vmem:[%s262 + $0x168] sm:$0xff] %v1785
            %1850 = vst [vmem:[%s262 + $0x170] sm:$0xff] %v1786
            %1851 = vst [vmem:[%s262 + $0x178] sm:$0xff] %v1787
            %1852 = vst [vmem:[%s262 + $0x180] sm:$0xff] %v1788
            %1853 = vst [vmem:[%s262 + $0x188] sm:$0xff] %v1789
            %1854 = vst [vmem:[%s262 + $0x190] sm:$0xff] %v1790
            %1855 = vst [vmem:[%s262 + $0x198] sm:$0xff] %v1791
            %1856 = vst [vmem:[%s262 + $0x1a0] sm:$0xff] %v1792
            %1857 = vst [vmem:[%s262 + $0x1a8] sm:$0xff] %v1793
            %1858 = vst [vmem:[%s262 + $0x1b0] sm:$0xff] %v1794
            %1859 = vst [vmem:[%s262 + $0x1b8] sm:$0xff] %v1795
            %1860 = vst [vmem:[%s262 + $0x1c0] sm:$0xff] %v1796
            %1861 = vst [vmem:[%s262 + $0x1c8] sm:$0xff] %v1797
            %1862 = vst [vmem:[%s262 + $0x1d0] sm:$0xff] %v1798
            %1863 = vst [vmem:[%s262 + $0x1d8] sm:$0xff] %v1799
            %1864 = vst [vmem:[%s262 + $0x1e0] sm:$0xff] %v1800
            %1865 = vst [vmem:[%s262 + $0x1e8] sm:$0xff] %v1801
            %1866 = vst [vmem:[%s262 + $0x1f0] sm:$0xff] %v1802
            %1867 = vst [vmem:[%s262 + $0x1f8] sm:$0xff] %v1803
          $region48: #{tpu_custom_call.1} parent=39 // pred_fallthru
            _
        $region40: #{tpu_custom_call.1} parent=27 // pred_fallthru
          _
        %s1868 = sand.u32 %s137, 1
        %s1869 = scalar_lea.sflag [#allocation10], %s1868
        %s1870 = sand.u32 %s137, 1
        %s1871 = smul.addr %s1870, 512
        %s1872 = scalar_lea.vmem [#allocation13], %s1871
        // Predicated region
        $region53: #{tpu_custom_call.1} parent=27 // pred_check
          %p1873 = pneg %p147
        $region54: #{tpu_custom_call.1} parent=27 // pred_check_branch
          %1875 = sbr.rel (%p1873) target = $region56
        $region55: #{tpu_custom_call.1} parent=27 // pred_region
          %s1876 = smul.u32 %s51, 11
          %s1877 = sadd.s32 %s1876, %s52
          %s1878 = sld [smem:[#allocation3 + %s1877]]
          %s1879 = smul.u32 64, %s1878
          %s1881 = ssub.s32 8192, 8192
          %1882 = vsyncadd %s1869, %s1881
          %s1883 = smul.addr %s1879, 128
          %s1884 = scalar_lea.hbm %s7, %s1883
          %s1885 = sshll.u32 %s1872, 4
          %s1886 = int_to_ptr.vmem [resolvable:$true] %s1885
          %1891 = dma.vmem_to_hbm [thread:$0]  %s1886, 8192, %s1884, %s1869, 128, 128, 8
        $region56: #{tpu_custom_call.1} parent=27 // pred_fallthru
          _
      $region28: #{tpu_custom_call.1} parent=5 // pred_fallthru
        _
      %p1892 = scmp.le.s32.totalorder 2, %s42
      // Predicated region
      $region57: #{tpu_custom_call.1} parent=5 // pred_check
        %p1893 = pneg %p1892
      $region58: #{tpu_custom_call.1} parent=5 // pred_check_branch
        %1895 = sbr.rel (%p1893) target = $region60
      $region59: #{tpu_custom_call.1} parent=5 // pred_region
        %s1896 = ssub.s32 %s42, 2
        // Predicated region
        $region61: #{tpu_custom_call.1} parent=59 // pred_check
          %p1897 = pneg %p153
        $region62: #{tpu_custom_call.1} parent=59 // pred_check_branch
          %1899 = sbr.rel (%p1897) target = $region64
        $region63: #{tpu_custom_call.1} parent=59 // pred_region
          %s1900 = sand.u32 %s138, 1
          %s1901 = scalar_lea.sflag [#allocation10], %s1900
          %s1902 = sand.u32 %s138, 1
          %s1903 = smul.addr %s1902, 512
          %s1904 = scalar_lea.vmem [#allocation13], %s1903
          %1905 = dma.done %s1901, 8192
        $region64: #{tpu_custom_call.1} parent=59 // pred_fallthru
          _
      $region60: #{tpu_custom_call.1} parent=5 // pred_fallthru
        _
    $region6: #{tpu_custom_call.1} parent=1 // loop_footer
      %s46 = sadd.s32 1, %s42
    $region7: #{tpu_custom_call.1} parent=1 // loop_footer_branch
      %41 = sbr.rel target = $region3
    $region8: #{tpu_custom_call.1} parent=1 // loop_exit
      _
    %1906 = vsyncpa [#allocation9], 1
    %s1907 = scalar_lea.sflag [#allocation9], 1
    %1908 = vsyncpa %s1907, 1
    %1909 = vsyncpa [#allocation12], 1
    %s1910 = scalar_lea.sflag [#allocation12], 1
    %1911 = vsyncpa %s1910, 1
    %1912 = vsyncpa [#allocation10], 1
    %s1913 = scalar_lea.sflag [#allocation10], 1
    %1914 = vsyncpa %s1913, 1

</llo_original>
